<compile_context>
chip_gen: v7x
topology: tpu7x:2x2x1
jax: 0.10.0
libtpu: 0.0.40
codegen_flags: <defaults>
</compile_context>

<pallas_src>
import functools

import numpy as np

import jax
import jax.numpy as jnp
from jax.experimental import pallas as pl
from jax.experimental.pallas import tpu as pltpu


def mbconv_kernel(x_ref, w_exp_ref, bn1_b_ref, dw_ref, bn2_b_ref, masks_ref,
                  se_w1_ref, se_b1_ref, se_w2_ref, se_b2_ref,
                  w_pw_ref, bn3_b_ref, o_ref, *, K, H, W, B_blk):
    """B_blk batch samples per grid step. Layout: channels on sublanes, H*W on lanes."""
    HW = H * W
    pad = (K - 1) // 2
    Cexp, Cin = w_exp_ref.shape

    # Weights loaded once per grid step (reused across the B_blk unrolled samples).
    w_exp = w_exp_ref[...]          # (Cexp, Cin)      BN1 scale pre-folded
    bn1_b = bn1_b_ref[...]          # (Cexp, 1)
    dw_all = dw_ref[...]            # (Cexp, K*K)      BN2 scale pre-folded
    bn2_b = bn2_b_ref[...]          # (Cexp, 1)
    se_w1 = se_w1_ref[...]          # (Cexp, Cred)
    se_b1 = se_b1_ref[...]          # (1, Cred)
    se_w2 = se_w2_ref[...]          # (Cexp, Cred)
    se_b2 = se_b2_ref[...]          # (Cexp, 1)
    w_pw = w_pw_ref[...]            # (Cout, Cexp)     BN3 scale pre-folded
    bn3_b = bn3_b_ref[...]          # (Cout, 1)

    for b in range(B_blk):          # static unroll; wrapper keeps B_blk small
        x = x_ref[b]                # (Cin, HW)

        # ---- expand: 1x1 conv + BN1 (bias = accumulator init) + SiLU ----
        if Cin <= 8:
            # Tiny contraction: cheaper as unrolled VPU FMAs than an MXU matmul
            # (a 4-deep contraction uses a sliver of the systolic array and can't
            #  hide fill/drain latency).
            e = jnp.broadcast_to(bn1_b, (Cexp, HW))
            for c in range(Cin):
                e = e + w_exp[:, c:c + 1] * x[c:c + 1, :]
        else:
            e = jnp.dot(w_exp, x, preferred_element_type=jnp.float32) + bn1_b
        e = e * jax.nn.sigmoid(e)                       # SiLU

        # ---- depthwise KxK, stride 1, 'same' zero padding + BN2 + SiLU ----
        # spatial index p = h*W + w lives on the lane axis; each tap is a lane
        # rotation (XLU slot) times a precomputed static boundary mask (no iota /
        # compares at runtime). BN2 bias is the accumulator init.
        acc = jnp.broadcast_to(bn2_b, (Cexp, HW))
        for kh in range(K):
            for kw in range(K):
                dh = kh - pad
                dv = kw - pad
                idx = kh * K + kw
                tap_w = dw_all[:, idx:idx + 1]          # (Cexp, 1)
                shift = dh * W + dv
                if shift == 0:
                    contrib = e                         # center tap: mask is all-ones
                else:
                    # rolled[p] = e[(p + shift) mod HW]; mask kills wrap / row leakage.
                    rolled = pltpu.roll(e, shift=(-shift) % HW, axis=1)
                    contrib = rolled * masks_ref[idx:idx + 1, :]
                acc = acc + contrib * tap_w
        d = acc * jax.nn.sigmoid(acc)                   # SiLU

        # ---- squeeze & excitation (VPU multiply + XLU reduce; no tiny MXU dots) ----
        y = jnp.mean(d, axis=1, keepdims=True)                               # (Cexp, 1)
        s1 = jnp.sum(se_w1 * y, axis=0, keepdims=True) + se_b1               # (1, Cred)
        s1 = s1 * jax.nn.sigmoid(s1)                                         # SiLU
        s2 = jnp.sum(se_w2 * s1, axis=1, keepdims=True) + se_b2              # (Cexp, 1)
        d = d * jax.nn.sigmoid(s2)                      # sigmoid gate, broadcast over lanes

        # ---- pointwise: (Cout,Cexp)@(Cexp,HW) on the MXU; no activation ----
        out = jnp.dot(w_pw, d, preferred_element_type=jnp.float32) + bn3_b
        o_ref[b] = out.astype(o_ref.dtype)              # lane-dense, unmasked store


def fold_params(p):
    """Fold BN scales into conv weights, transpose to the kernel's channels-first layout."""
    cexp = p["w_exp"].shape[1]
    cout = p["w_pw"].shape[1]
    cred = p["se_w1"].shape[1]
    kp = {}
    kp["w_exp"] = jnp.transpose(p["w_exp"] * p["bn1_s"])        # (Cexp, Cin)
    kp["bn1_b"] = p["bn1_b"].reshape(cexp, 1)
    kp["dw_w"] = jnp.transpose(p["dw_w"] * p["bn2_s"])          # (Cexp, K*K)
    kp["bn2_b"] = p["bn2_b"].reshape(cexp, 1)
    kp["se_w1"] = p["se_w1"]                                    # (Cexp, Cred)
    kp["se_b1"] = p["se_b1"].reshape(1, cred)
    kp["se_w2"] = jnp.transpose(p["se_w2"])                     # (Cexp, Cred)
    kp["se_b2"] = p["se_b2"].reshape(cexp, 1)
    kp["w_pw"] = jnp.transpose(p["w_pw"] * p["bn3_s"])          # (Cout, Cexp)
    kp["bn3_b"] = p["bn3_b"].reshape(cout, 1)
    return kp


def _make_dw_masks(K, H, W):
    """Static per-tap boundary masks, (K*K, H*W) f32, computed at trace time with numpy."""
    pad = (K - 1) // 2
    HW = H * W
    h_idx = np.arange(HW) // W
    w_idx = np.arange(HW) % W
    masks = np.zeros((K * K, HW), np.float32)
    for kh in range(K):
        for kw in range(K):
            dh, dv = kh - pad, kw - pad
            valid = ((h_idx + dh >= 0) & (h_idx + dh < H) &
                     (w_idx + dv >= 0) & (w_idx + dv < W))
            masks[kh * K + kw] = valid.astype(np.float32)
    return jnp.asarray(masks)


def _choose_batch_block(N):
    """Samples per grid step: amortize per-step overhead but keep >=2 grid steps so the
    'parallel' batch axis can shard across TensorCores (v7x megacore); cap the in-kernel
    unroll (and per-step VMEM block) at 8 samples."""
    if N <= 1:
        return 1
    blk = max(1, min(8, N // 2))
    while N % blk:
        blk -= 1
    return blk


def mbconv_forward(x_nchw, p, kernel_size, batch_block=None):
    N, Cin, H, W = x_nchw.shape
    HW = H * W
    K = kernel_size
    pad = (K - 1) // 2
    # Roll-based depthwise requires |dh*W + dv| < H*W or taps alias across the wrap.
    assert pad * (W + 1) < HW, "roll+mask depthwise needs pad*(W+1) < H*W"

    kp = fold_params(p)
    Cout = kp["w_pw"].shape[0]
    masks = _make_dw_masks(K, H, W)

    B_blk = _choose_batch_block(N) if batch_block is None else batch_block
    assert N % B_blk == 0, "batch must tile evenly by the batch block"

    # NCHW -> (N, Cin, H*W): a pure reshape, no transpose pass over HBM.
    x = x_nchw.reshape(N, Cin, HW).astype(jnp.float32)

    def pinned(shape):
        # Weights / masks stay VMEM-resident: constant block index across the grid.
        return pl.BlockSpec(shape, lambda n: (0,) * len(shape))

    weight_args = (kp["w_exp"], kp["bn1_b"], kp["dw_w"], kp["bn2_b"], masks,
                   kp["se_w1"], kp["se_b1"], kp["se_w2"], kp["se_b2"],
                   kp["w_pw"], kp["bn3_b"])

    out = pl.pallas_call(
        functools.partial(mbconv_kernel, K=K, H=H, W=W, B_blk=B_blk),
        out_shape=jax.ShapeDtypeStruct((N, Cout, HW), jnp.float32),
        grid=(N // B_blk,),
        in_specs=[pl.BlockSpec((B_blk, Cin, HW), lambda n: (n, 0, 0))]
                 + [pinned(w.shape) for w in weight_args],
        out_specs=pl.BlockSpec((B_blk, Cout, HW), lambda n: (n, 0, 0)),
        compiler_params=pltpu.CompilerParams(
            dimension_semantics=("parallel",),
            vmem_limit_bytes=32 * 1024 * 1024),
    )(x, *weight_args)
    return out.reshape(N, Cout, H, W)


def init_params(key, cin, cout, expansion, K, reduction=4):
    """Deterministic synthetic parameters (BN stats + matmul-layout conv weights)."""
    cexp = int(cin * expansion)
    cred = max(1, cin // reduction)
    ks = jax.random.split(key, 10)

    def bn_fold(kg, c):
        k1, k2, k3, k4 = jax.random.split(kg, 4)
        gamma = 1.0 + 0.1 * jax.random.normal(k1, (c,))
        beta = 0.1 * jax.random.normal(k2, (c,))
        mean = 0.1 * jax.random.normal(k3, (c,))
        var = jax.random.uniform(k4, (c,), minval=0.5, maxval=1.5)
        scale = gamma / jnp.sqrt(var + 1e-5)
        bias = beta - mean * scale
        return (scale.reshape(1, c).astype(jnp.float32),
                bias.reshape(1, c).astype(jnp.float32))

    p = {}
    p["w_exp"] = (0.2 * jax.random.normal(ks[0], (cin, cexp))).astype(jnp.float32)
    p["bn1_s"], p["bn1_b"] = bn_fold(ks[1], cexp)
    p["dw_w"] = (0.2 * jax.random.normal(ks[2], (K * K, cexp))).astype(jnp.float32)
    p["bn2_s"], p["bn2_b"] = bn_fold(ks[3], cexp)
    p["se_w1"] = (0.2 * jax.random.normal(ks[4], (cexp, cred))).astype(jnp.float32)
    p["se_b1"] = (0.1 * jax.random.normal(ks[5], (1, cred))).astype(jnp.float32)
    p["se_w2"] = (0.2 * jax.random.normal(ks[6], (cred, cexp))).astype(jnp.float32)
    p["se_b2"] = (0.1 * jax.random.normal(ks[7], (1, cexp))).astype(jnp.float32)
    p["w_pw"] = (0.2 * jax.random.normal(ks[8], (cexp, cout))).astype(jnp.float32)
    p["bn3_s"], p["bn3_b"] = bn_fold(ks[9], cout)
    return p


def mbconv_ref(x_nchw, p, K):
    """Plain-JAX reference of the same forward (unfolded params), for correctness checking."""
    x = jnp.transpose(x_nchw, (0, 2, 3, 1)).astype(jnp.float32)
    N, H, W, Cin = x.shape
    cexp = p["w_exp"].shape[1]
    pad = (K - 1) // 2
    e = jnp.einsum("nhwc,cd->nhwd", x, p["w_exp"],
                   precision=jax.lax.Precision.HIGHEST)
    e = e * p["bn1_s"].reshape(1, 1, 1, -1) + p["bn1_b"].reshape(1, 1, 1, -1)
    e = e * jax.nn.sigmoid(e)
    ep = jnp.pad(e, ((0, 0), (pad, pad), (pad, pad), (0, 0)))
    dw = p["dw_w"].reshape(K, K, cexp)
    acc = jnp.zeros_like(e)
    for kh in range(K):
        for kw in range(K):
            acc = acc + ep[:, kh:kh + H, kw:kw + W, :] * dw[kh, kw].reshape(1, 1, 1, -1)
    d = acc * p["bn2_s"].reshape(1, 1, 1, -1) + p["bn2_b"].reshape(1, 1, 1, -1)
    d = d * jax.nn.sigmoid(d)
    y = jnp.mean(d, axis=(1, 2))
    s1 = y @ p["se_w1"] + p["se_b1"]
    s1 = s1 * jax.nn.sigmoid(s1)
    s2 = jax.nn.sigmoid(s1 @ p["se_w2"] + p["se_b2"])
    d = d * s2[:, None, None, :]
    o = jnp.einsum("nhwc,cd->nhwd", d, p["w_pw"],
                   precision=jax.lax.Precision.HIGHEST)
    o = o * p["bn3_s"].reshape(1, 1, 1, -1) + p["bn3_b"].reshape(1, 1, 1, -1)
    return jnp.transpose(o, (0, 3, 1, 2))


if __name__ == "__main__":
    key = jax.random.PRNGKey(0)
    kx, kp = jax.random.split(key)

    # MBConvBlock(input_channels=4, out_channels=8, expansion_factor=4,
    #             drop_connect_prob=0.2, kernel_size=3, stride=1, reduction_factor=4)
    N, Cin, H, W = 2, 4, 16, 16
    Cout, expansion, K = 8, 4, 3
    # skip_connection = (stride == 1 and Cin == Cout) -> False for this config.

    x = jax.random.normal(kx, (N, Cin, H, W), dtype=jnp.float32)
    params = init_params(kp, Cin, Cout, expansion, K, reduction=4)

    out = mbconv_forward(x, params, K)
    out = jax.block_until_ready(out)

    ref = mbconv_ref(x, params, K)
    assert out.shape == (N, Cout, H, W), out.shape
    max_err = float(jnp.max(jnp.abs(out - ref)))
    if not bool(jnp.allclose(out, ref, rtol=2e-3, atol=2e-3)):
        raise AssertionError(f"Pallas output mismatch vs JAX reference, max abs err={max_err}")
    print("KERNEL_OK")
</pallas_src>

<mosaic_0001>
module attributes {stable_mosaic.version = 11 : i64} {
  func.func @mbconv_kernel(%arg0: i32, %arg1: memref<1x4x256xf32, #tpu.memory_space<vmem>>, %arg2: memref<16x4xf32, #tpu.memory_space<vmem>>, %arg3: memref<16x1xf32, #tpu.memory_space<vmem>>, %arg4: memref<16x9xf32, #tpu.memory_space<vmem>>, %arg5: memref<16x1xf32, #tpu.memory_space<vmem>>, %arg6: memref<9x256xf32, #tpu.memory_space<vmem>>, %arg7: memref<16x1xf32, #tpu.memory_space<vmem>>, %arg8: memref<1x1xf32, #tpu.memory_space<vmem>>, %arg9: memref<16x1xf32, #tpu.memory_space<vmem>>, %arg10: memref<16x1xf32, #tpu.memory_space<vmem>>, %arg11: memref<8x16xf32, #tpu.memory_space<vmem>>, %arg12: memref<8x1xf32, #tpu.memory_space<vmem>>, %arg13: memref<1x8x256xf32, #tpu.memory_space<vmem>>) attributes {dimension_semantics = [#tpu.dimension_semantics<parallel>], iteration_bounds = array<i64: 2>, scalar_prefetch = 0 : i64, scratch_operands = 0 : i64, tpu.core_type = #tpu.core_type<tc>, window_params = [{transform_indices = @transform_0, window_bounds = array<i64: 1, 4, 256>}, {pipeline_mode = #tpu.pipeline_mode<synchronous>, transform_indices = @transform_1, window_bounds = array<i64: 16, 4>}, {pipeline_mode = #tpu.pipeline_mode<synchronous>, transform_indices = @transform_2, window_bounds = array<i64: 16, 1>}, {pipeline_mode = #tpu.pipeline_mode<synchronous>, transform_indices = @transform_3, window_bounds = array<i64: 16, 9>}, {pipeline_mode = #tpu.pipeline_mode<synchronous>, transform_indices = @transform_4, window_bounds = array<i64: 16, 1>}, {pipeline_mode = #tpu.pipeline_mode<synchronous>, transform_indices = @transform_5, window_bounds = array<i64: 9, 256>}, {pipeline_mode = #tpu.pipeline_mode<synchronous>, transform_indices = @transform_6, window_bounds = array<i64: 16, 1>}, {pipeline_mode = #tpu.pipeline_mode<synchronous>, transform_indices = @transform_7, window_bounds = array<i64: 1, 1>}, {pipeline_mode = #tpu.pipeline_mode<synchronous>, transform_indices = @transform_8, window_bounds = array<i64: 16, 1>}, {pipeline_mode = #tpu.pipeline_mode<synchronous>, transform_indices = @transform_9, window_bounds = array<i64: 16, 1>}, {pipeline_mode = #tpu.pipeline_mode<synchronous>, transform_indices = @transform_10, window_bounds = array<i64: 8, 16>}, {pipeline_mode = #tpu.pipeline_mode<synchronous>, transform_indices = @transform_11, window_bounds = array<i64: 8, 1>}, {transform_indices = @transform_12, window_bounds = array<i64: 1, 8, 256>}]} {
    %c0 = arith.constant 0 : index
    %c0_0 = arith.constant 0 : index
    %0 = vector.load %arg2[%c0, %c0_0] : memref<16x4xf32, #tpu.memory_space<vmem>>, vector<16x4xf32>
    %c0_1 = arith.constant 0 : index
    %c0_2 = arith.constant 0 : index
    %1 = vector.load %arg3[%c0_1, %c0_2] : memref<16x1xf32, #tpu.memory_space<vmem>>, vector<16x1xf32>
    %c0_3 = arith.constant 0 : index
    %c0_4 = arith.constant 0 : index
    %2 = vector.load %arg4[%c0_3, %c0_4] : memref<16x9xf32, #tpu.memory_space<vmem>>, vector<16x9xf32>
    %c0_5 = arith.constant 0 : index
    %c0_6 = arith.constant 0 : index
    %3 = vector.load %arg5[%c0_5, %c0_6] : memref<16x1xf32, #tpu.memory_space<vmem>>, vector<16x1xf32>
    %c0_7 = arith.constant 0 : index
    %c0_8 = arith.constant 0 : index
    %4 = vector.load %arg7[%c0_7, %c0_8] : memref<16x1xf32, #tpu.memory_space<vmem>>, vector<16x1xf32>
    %c0_9 = arith.constant 0 : index
    %c0_10 = arith.constant 0 : index
    %5 = vector.load %arg8[%c0_9, %c0_10] : memref<1x1xf32, #tpu.memory_space<vmem>>, vector<1x1xf32>
    %c0_11 = arith.constant 0 : index
    %c0_12 = arith.constant 0 : index
    %6 = vector.load %arg9[%c0_11, %c0_12] : memref<16x1xf32, #tpu.memory_space<vmem>>, vector<16x1xf32>
    %c0_13 = arith.constant 0 : index
    %c0_14 = arith.constant 0 : index
    %7 = vector.load %arg10[%c0_13, %c0_14] : memref<16x1xf32, #tpu.memory_space<vmem>>, vector<16x1xf32>
    %c0_15 = arith.constant 0 : index
    %c0_16 = arith.constant 0 : index
    %8 = vector.load %arg11[%c0_15, %c0_16] : memref<8x16xf32, #tpu.memory_space<vmem>>, vector<8x16xf32>
    %c0_17 = arith.constant 0 : index
    %c0_18 = arith.constant 0 : index
    %9 = vector.load %arg12[%c0_17, %c0_18] : memref<8x1xf32, #tpu.memory_space<vmem>>, vector<8x1xf32>
    %c0_19 = arith.constant 0 : index
    %c0_20 = arith.constant 0 : index
    %c0_21 = arith.constant 0 : index
    %10 = vector.load %arg1[%c0_19, %c0_20, %c0_21] : memref<1x4x256xf32, #tpu.memory_space<vmem>>, vector<1x4x256xf32>
    %11 = vector.shape_cast %10 : vector<1x4x256xf32> to vector<4x256xf32>
    %12 = vector.shape_cast %1 : vector<16x1xf32> to vector<16x1xf32>
    %13 = vector.broadcast %12 : vector<16x1xf32> to vector<16x256xf32>
    %14 = vector.extract_strided_slice %0 {offsets = [0, 0], sizes = [16, 1], strides = [1, 1]} : vector<16x4xf32> to vector<16x1xf32>
    %15 = vector.extract_strided_slice %11 {offsets = [0, 0], sizes = [1, 256], strides = [1, 1]} : vector<4x256xf32> to vector<1x256xf32>
    %16 = vector.broadcast %14 : vector<16x1xf32> to vector<16x256xf32>
    %17 = vector.broadcast %15 : vector<1x256xf32> to vector<16x256xf32>
    %18 = arith.mulf %16, %17 : vector<16x256xf32>
    %19 = arith.addf %13, %18 : vector<16x256xf32>
    %20 = vector.extract_strided_slice %0 {offsets = [0, 1], sizes = [16, 1], strides = [1, 1]} : vector<16x4xf32> to vector<16x1xf32>
    %21 = vector.extract_strided_slice %11 {offsets = [1, 0], sizes = [1, 256], strides = [1, 1]} : vector<4x256xf32> to vector<1x256xf32>
    %22 = vector.broadcast %20 : vector<16x1xf32> to vector<16x256xf32>
    %23 = vector.broadcast %21 : vector<1x256xf32> to vector<16x256xf32>
    %24 = arith.mulf %22, %23 : vector<16x256xf32>
    %25 = arith.addf %19, %24 : vector<16x256xf32>
    %26 = vector.extract_strided_slice %0 {offsets = [0, 2], sizes = [16, 1], strides = [1, 1]} : vector<16x4xf32> to vector<16x1xf32>
    %27 = vector.extract_strided_slice %11 {offsets = [2, 0], sizes = [1, 256], strides = [1, 1]} : vector<4x256xf32> to vector<1x256xf32>
    %28 = vector.broadcast %26 : vector<16x1xf32> to vector<16x256xf32>
    %29 = vector.broadcast %27 : vector<1x256xf32> to vector<16x256xf32>
    %30 = arith.mulf %28, %29 : vector<16x256xf32>
    %31 = arith.addf %25, %30 : vector<16x256xf32>
    %32 = vector.extract_strided_slice %0 {offsets = [0, 3], sizes = [16, 1], strides = [1, 1]} : vector<16x4xf32> to vector<16x1xf32>
    %33 = vector.extract_strided_slice %11 {offsets = [3, 0], sizes = [1, 256], strides = [1, 1]} : vector<4x256xf32> to vector<1x256xf32>
    %34 = vector.broadcast %32 : vector<16x1xf32> to vector<16x256xf32>
    %35 = vector.broadcast %33 : vector<1x256xf32> to vector<16x256xf32>
    %36 = arith.mulf %34, %35 : vector<16x256xf32>
    %37 = arith.addf %31, %36 : vector<16x256xf32>
    %38 = arith.negf %37 : vector<16x256xf32>
    %39 = math.exp %38 : vector<16x256xf32>
    %cst = arith.constant 1.000000e+00 : f32
    %40 = vector.broadcast %cst : f32 to vector<16x256xf32>
    %41 = arith.addf %40, %39 : vector<16x256xf32>
    %42 = arith.divf %40, %41 : vector<16x256xf32>
    %43 = arith.mulf %37, %42 : vector<16x256xf32>
    %44 = vector.shape_cast %3 : vector<16x1xf32> to vector<16x1xf32>
    %45 = vector.broadcast %44 : vector<16x1xf32> to vector<16x256xf32>
    %46 = vector.extract_strided_slice %2 {offsets = [0, 0], sizes = [16, 1], strides = [1, 1]} : vector<16x9xf32> to vector<16x1xf32>
    %c17_i32 = arith.constant 17 : i32
    %47 = tpu.dynamic_rotate %43 by %c17_i32 dim 1 : vector<16x256xf32>, i32 -> vector<16x256xf32>
    %c0_22 = arith.constant 0 : index
    %c0_23 = arith.constant 0 : index
    %48 = vector.load %arg6[%c0_22, %c0_23] : memref<9x256xf32, #tpu.memory_space<vmem>>, vector<1x256xf32>
    %49 = vector.broadcast %48 : vector<1x256xf32> to vector<16x256xf32>
    %50 = arith.mulf %47, %49 : vector<16x256xf32>
    %51 = vector.broadcast %46 : vector<16x1xf32> to vector<16x256xf32>
    %52 = arith.mulf %50, %51 : vector<16x256xf32>
    %53 = arith.addf %45, %52 : vector<16x256xf32>
    %54 = vector.extract_strided_slice %2 {offsets = [0, 1], sizes = [16, 1], strides = [1, 1]} : vector<16x9xf32> to vector<16x1xf32>
    %c16_i32 = arith.constant 16 : i32
    %55 = tpu.dynamic_rotate %43 by %c16_i32 dim 1 : vector<16x256xf32>, i32 -> vector<16x256xf32>
    %c1 = arith.constant 1 : index
    %c0_24 = arith.constant 0 : index
    %56 = vector.load %arg6[%c1, %c0_24] : memref<9x256xf32, #tpu.memory_space<vmem>>, vector<1x256xf32>
    %57 = vector.broadcast %56 : vector<1x256xf32> to vector<16x256xf32>
    %58 = arith.mulf %55, %57 : vector<16x256xf32>
    %59 = vector.broadcast %54 : vector<16x1xf32> to vector<16x256xf32>
    %60 = arith.mulf %58, %59 : vector<16x256xf32>
    %61 = arith.addf %53, %60 : vector<16x256xf32>
    %62 = vector.extract_strided_slice %2 {offsets = [0, 2], sizes = [16, 1], strides = [1, 1]} : vector<16x9xf32> to vector<16x1xf32>
    %c15_i32 = arith.constant 15 : i32
    %63 = tpu.dynamic_rotate %43 by %c15_i32 dim 1 : vector<16x256xf32>, i32 -> vector<16x256xf32>
    %c2 = arith.constant 2 : index
    %c0_25 = arith.constant 0 : index
    %64 = vector.load %arg6[%c2, %c0_25] : memref<9x256xf32, #tpu.memory_space<vmem>>, vector<1x256xf32>
    %65 = vector.broadcast %64 : vector<1x256xf32> to vector<16x256xf32>
    %66 = arith.mulf %63, %65 : vector<16x256xf32>
    %67 = vector.broadcast %62 : vector<16x1xf32> to vector<16x256xf32>
    %68 = arith.mulf %66, %67 : vector<16x256xf32>
    %69 = arith.addf %61, %68 : vector<16x256xf32>
    %70 = vector.extract_strided_slice %2 {offsets = [0, 3], sizes = [16, 1], strides = [1, 1]} : vector<16x9xf32> to vector<16x1xf32>
    %c1_i32 = arith.constant 1 : i32
    %71 = tpu.dynamic_rotate %43 by %c1_i32 dim 1 : vector<16x256xf32>, i32 -> vector<16x256xf32>
    %c3 = arith.constant 3 : index
    %c0_26 = arith.constant 0 : index
    %72 = vector.load %arg6[%c3, %c0_26] : memref<9x256xf32, #tpu.memory_space<vmem>>, vector<1x256xf32>
    %73 = vector.broadcast %72 : vector<1x256xf32> to vector<16x256xf32>
    %74 = arith.mulf %71, %73 : vector<16x256xf32>
    %75 = vector.broadcast %70 : vector<16x1xf32> to vector<16x256xf32>
    %76 = arith.mulf %74, %75 : vector<16x256xf32>
    %77 = arith.addf %69, %76 : vector<16x256xf32>
    %78 = vector.extract_strided_slice %2 {offsets = [0, 4], sizes = [16, 1], strides = [1, 1]} : vector<16x9xf32> to vector<16x1xf32>
    %79 = vector.broadcast %78 : vector<16x1xf32> to vector<16x256xf32>
    %80 = arith.mulf %43, %79 : vector<16x256xf32>
    %81 = arith.addf %77, %80 : vector<16x256xf32>
    %82 = vector.extract_strided_slice %2 {offsets = [0, 5], sizes = [16, 1], strides = [1, 1]} : vector<16x9xf32> to vector<16x1xf32>
    %c255_i32 = arith.constant 255 : i32
    %83 = tpu.dynamic_rotate %43 by %c255_i32 dim 1 : vector<16x256xf32>, i32 -> vector<16x256xf32>
    %c5 = arith.constant 5 : index
    %c0_27 = arith.constant 0 : index
    %84 = vector.load %arg6[%c5, %c0_27] : memref<9x256xf32, #tpu.memory_space<vmem>>, vector<1x256xf32>
    %85 = vector.broadcast %84 : vector<1x256xf32> to vector<16x256xf32>
    %86 = arith.mulf %83, %85 : vector<16x256xf32>
    %87 = vector.broadcast %82 : vector<16x1xf32> to vector<16x256xf32>
    %88 = arith.mulf %86, %87 : vector<16x256xf32>
    %89 = arith.addf %81, %88 : vector<16x256xf32>
    %90 = vector.extract_strided_slice %2 {offsets = [0, 6], sizes = [16, 1], strides = [1, 1]} : vector<16x9xf32> to vector<16x1xf32>
    %c241_i32 = arith.constant 241 : i32
    %91 = tpu.dynamic_rotate %43 by %c241_i32 dim 1 : vector<16x256xf32>, i32 -> vector<16x256xf32>
    %c6 = arith.constant 6 : index
    %c0_28 = arith.constant 0 : index
    %92 = vector.load %arg6[%c6, %c0_28] : memref<9x256xf32, #tpu.memory_space<vmem>>, vector<1x256xf32>
    %93 = vector.broadcast %92 : vector<1x256xf32> to vector<16x256xf32>
    %94 = arith.mulf %91, %93 : vector<16x256xf32>
    %95 = vector.broadcast %90 : vector<16x1xf32> to vector<16x256xf32>
    %96 = arith.mulf %94, %95 : vector<16x256xf32>
    %97 = arith.addf %89, %96 : vector<16x256xf32>
    %98 = vector.extract_strided_slice %2 {offsets = [0, 7], sizes = [16, 1], strides = [1, 1]} : vector<16x9xf32> to vector<16x1xf32>
    %c240_i32 = arith.constant 240 : i32
    %99 = tpu.dynamic_rotate %43 by %c240_i32 dim 1 : vector<16x256xf32>, i32 -> vector<16x256xf32>
    %c7 = arith.constant 7 : index
    %c0_29 = arith.constant 0 : index
    %100 = vector.load %arg6[%c7, %c0_29] : memref<9x256xf32, #tpu.memory_space<vmem>>, vector<1x256xf32>
    %101 = vector.broadcast %100 : vector<1x256xf32> to vector<16x256xf32>
    %102 = arith.mulf %99, %101 : vector<16x256xf32>
    %103 = vector.broadcast %98 : vector<16x1xf32> to vector<16x256xf32>
    %104 = arith.mulf %102, %103 : vector<16x256xf32>
    %105 = arith.addf %97, %104 : vector<16x256xf32>
    %106 = vector.extract_strided_slice %2 {offsets = [0, 8], sizes = [16, 1], strides = [1, 1]} : vector<16x9xf32> to vector<16x1xf32>
    %c239_i32 = arith.constant 239 : i32
    %107 = tpu.dynamic_rotate %43 by %c239_i32 dim 1 : vector<16x256xf32>, i32 -> vector<16x256xf32>
    %c8 = arith.constant 8 : index
    %c0_30 = arith.constant 0 : index
    %108 = vector.load %arg6[%c8, %c0_30] : memref<9x256xf32, #tpu.memory_space<vmem>>, vector<1x256xf32>
    %109 = vector.broadcast %108 : vector<1x256xf32> to vector<16x256xf32>
    %110 = arith.mulf %107, %109 : vector<16x256xf32>
    %111 = vector.broadcast %106 : vector<16x1xf32> to vector<16x256xf32>
    %112 = arith.mulf %110, %111 : vector<16x256xf32>
    %113 = arith.addf %105, %112 : vector<16x256xf32>
    %114 = arith.negf %113 : vector<16x256xf32>
    %115 = math.exp %114 : vector<16x256xf32>
    %cst_31 = arith.constant 1.000000e+00 : f32
    %116 = vector.broadcast %cst_31 : f32 to vector<16x256xf32>
    %117 = arith.addf %116, %115 : vector<16x256xf32>
    %118 = arith.divf %116, %117 : vector<16x256xf32>
    %119 = arith.mulf %113, %118 : vector<16x256xf32>
    %cst_32 = arith.constant dense<0.000000e+00> : vector<16xf32>
    %120 = vector.multi_reduction <add>, %119, %cst_32 [1] : vector<16x256xf32> to vector<16xf32>
    %121 = vector.shape_cast %120 : vector<16xf32> to vector<16x1xf32>
    %cst_33 = arith.constant 2.560000e+02 : f32
    %122 = vector.broadcast %cst_33 : f32 to vector<16x1xf32>
    %123 = arith.divf %121, %122 : vector<16x1xf32>
    %124 = arith.mulf %4, %123 : vector<16x1xf32>
    %cst_34 = arith.constant dense<0.000000e+00> : vector<1xf32>
    %125 = vector.multi_reduction <add>, %124, %cst_34 [0] : vector<16x1xf32> to vector<1xf32>
    %126 = vector.shape_cast %125 : vector<1xf32> to vector<1x1xf32>
    %127 = arith.addf %126, %5 : vector<1x1xf32>
    %128 = arith.negf %127 : vector<1x1xf32>
    %129 = math.exp %128 : vector<1x1xf32>
    %cst_35 = arith.constant 1.000000e+00 : f32
    %130 = vector.broadcast %cst_35 : f32 to vector<1x1xf32>
    %131 = arith.addf %130, %129 : vector<1x1xf32>
    %132 = arith.divf %130, %131 : vector<1x1xf32>
    %133 = arith.mulf %127, %132 : vector<1x1xf32>
    %134 = vector.broadcast %133 : vector<1x1xf32> to vector<16x1xf32>
    %135 = arith.mulf %6, %134 : vector<16x1xf32>
    %cst_36 = arith.constant dense<0.000000e+00> : vector<16xf32>
    %136 = vector.multi_reduction <add>, %135, %cst_36 [1] : vector<16x1xf32> to vector<16xf32>
    %137 = vector.shape_cast %136 : vector<16xf32> to vector<16x1xf32>
    %138 = arith.addf %137, %7 : vector<16x1xf32>
    %139 = arith.negf %138 : vector<16x1xf32>
    %140 = math.exp %139 : vector<16x1xf32>
    %cst_37 = arith.constant 1.000000e+00 : f32
    %141 = vector.broadcast %cst_37 : f32 to vector<16x1xf32>
    %142 = arith.addf %141, %140 : vector<16x1xf32>
    %143 = arith.divf %141, %142 : vector<16x1xf32>
    %144 = vector.broadcast %143 : vector<16x1xf32> to vector<16x256xf32>
    %145 = arith.mulf %119, %144 : vector<16x256xf32>
    %cst_38 = arith.constant dense<0.000000e+00> : vector<8x256xf32>
    %146 = tpu.matmul %8, %145, %cst_38 {dimension_numbers = #tpu.dot_dimension_numbers<[1], [0], [0], [1], [0, 0, 1, 1], [], []>} : vector<8x16xf32>, vector<16x256xf32>, vector<8x256xf32> -> vector<8x256xf32>
    %147 = vector.broadcast %9 : vector<8x1xf32> to vector<8x256xf32>
    %148 = arith.addf %146, %147 : vector<8x256xf32>
    %c0_39 = arith.constant 0 : index
    %c0_40 = arith.constant 0 : index
    %c0_41 = arith.constant 0 : index
    %149 = vector.load %arg13[%c0_39, %c0_40, %c0_41] : memref<1x8x256xf32, #tpu.memory_space<vmem>>, vector<1x8x256xf32>
    %150 = vector.shape_cast %149 : vector<1x8x256xf32> to vector<8x256xf32>
    %151 = vector.shape_cast %148 : vector<8x256xf32> to vector<1x8x256xf32>
    tpu.vector_store %arg13[%c0_39, %c0_40, %c0_41], %151 {strides = array<i32>} : memref<1x8x256xf32, #tpu.memory_space<vmem>>, vector<1x8x256xf32>,
    return
  }
  func.func @transform_0(%arg0: i32) -> (i32, i32, i32) {
    %c0_i32 = arith.constant 0 : i32
    %c0_i32_0 = arith.constant 0 : i32
    %c0_i32_1 = arith.constant 0 : i32
    return %arg0, %c0_i32, %c0_i32_0 : i32, i32, i32
  }
  func.func @transform_1(%arg0: i32) -> (i32, i32) {
    %c0_i32 = arith.constant 0 : i32
    %c0_i32_0 = arith.constant 0 : i32
    %c0_i32_1 = arith.constant 0 : i32
    return %c0_i32, %c0_i32_0 : i32, i32
  }
  func.func @transform_2(%arg0: i32) -> (i32, i32) {
    %c0_i32 = arith.constant 0 : i32
    %c0_i32_0 = arith.constant 0 : i32
    %c0_i32_1 = arith.constant 0 : i32
    return %c0_i32, %c0_i32_0 : i32, i32
  }
  func.func @transform_3(%arg0: i32) -> (i32, i32) {
    %c0_i32 = arith.constant 0 : i32
    %c0_i32_0 = arith.constant 0 : i32
    %c0_i32_1 = arith.constant 0 : i32
    return %c0_i32, %c0_i32_0 : i32, i32
  }
  func.func @transform_4(%arg0: i32) -> (i32, i32) {
    %c0_i32 = arith.constant 0 : i32
    %c0_i32_0 = arith.constant 0 : i32
    %c0_i32_1 = arith.constant 0 : i32
    return %c0_i32, %c0_i32_0 : i32, i32
  }
  func.func @transform_5(%arg0: i32) -> (i32, i32) {
    %c0_i32 = arith.constant 0 : i32
    %c0_i32_0 = arith.constant 0 : i32
    %c0_i32_1 = arith.constant 0 : i32
    return %c0_i32, %c0_i32_0 : i32, i32
  }
  func.func @transform_6(%arg0: i32) -> (i32, i32) {
    %c0_i32 = arith.constant 0 : i32
    %c0_i32_0 = arith.constant 0 : i32
    %c0_i32_1 = arith.constant 0 : i32
    return %c0_i32, %c0_i32_0 : i32, i32
  }
  func.func @transform_7(%arg0: i32) -> (i32, i32) {
    %c0_i32 = arith.constant 0 : i32
    %c0_i32_0 = arith.constant 0 : i32
    %c0_i32_1 = arith.constant 0 : i32
    return %c0_i32, %c0_i32_0 : i32, i32
  }
  func.func @transform_8(%arg0: i32) -> (i32, i32) {
    %c0_i32 = arith.constant 0 : i32
    %c0_i32_0 = arith.constant 0 : i32
    %c0_i32_1 = arith.constant 0 : i32
    return %c0_i32, %c0_i32_0 : i32, i32
  }
  func.func @transform_9(%arg0: i32) -> (i32, i32) {
    %c0_i32 = arith.constant 0 : i32
    %c0_i32_0 = arith.constant 0 : i32
    %c0_i32_1 = arith.constant 0 : i32
    return %c0_i32, %c0_i32_0 : i32, i32
  }
  func.func @transform_10(%arg0: i32) -> (i32, i32) {
    %c0_i32 = arith.constant 0 : i32
    %c0_i32_0 = arith.constant 0 : i32
    %c0_i32_1 = arith.constant 0 : i32
    return %c0_i32, %c0_i32_0 : i32, i32
  }
  func.func @transform_11(%arg0: i32) -> (i32, i32) {
    %c0_i32 = arith.constant 0 : i32
    %c0_i32_0 = arith.constant 0 : i32
    %c0_i32_1 = arith.constant 0 : i32
    return %c0_i32, %c0_i32_0 : i32, i32
  }
  func.func @transform_12(%arg0: i32) -> (i32, i32, i32) {
    %c0_i32 = arith.constant 0 : i32
    %c0_i32_0 = arith.constant 0 : i32
    %c0_i32_1 = arith.constant 0 : i32
    return %arg0, %c0_i32, %c0_i32_0 : i32, i32, i32
  }
}

</mosaic_0001>

<llo_original>
// kernel: tpu_custom_call.1
$region0: #{tpu_custom_call.1}
  #allocation0 [shape = 'u32[]', space=smem, size = 0x4, offset = 0x4, fixed_abs, tag = 'smem constant byte address 0x4 - core index']
  #allocation1 [shape = 'u32[144,128]{1,0:T(1,128)}', space=vmem, size = 0x12000, scoped, tag = 'internal scratch']
  #allocation2 [shape = 'f32[1,1]{1,0:T(1,128)S(1)}', space=vmem, size = 0x200, scoped, tag = 'scoped memory for tpu_custom_call.1']
  %s0 = inlined_call_operand.vmem [shape: f32[2,4,256], index: 0, kind: input, shape index: {}]
  %s1 = inlined_call_operand.vmem [shape: f32[16,4], index: 1, kind: input, shape index: {}]
  %s2 = inlined_call_operand.vmem [shape: f32[16,1], index: 2, kind: input, shape index: {}]
  %s3 = inlined_call_operand.vmem [shape: f32[16,9], index: 3, kind: input, shape index: {}]
  %s4 = inlined_call_operand.vmem [shape: f32[16,1], index: 4, kind: input, shape index: {}]
  %s5 = inlined_call_operand.vmem [shape: f32[9,256], index: 5, kind: input, shape index: {}]
  %s6 = inlined_call_operand.vmem [shape: f32[16,1], index: 6, kind: input, shape index: {}]
  %s7 = inlined_call_operand.<no memory space> [shape: f32[1,1], index: 7, kind: input, shape index: {}]
  %s8 = inlined_call_operand.vmem [shape: f32[16,1], index: 8, kind: input, shape index: {}]
  %s9 = inlined_call_operand.vmem [shape: f32[16,1], index: 9, kind: input, shape index: {}]
  %s10 = inlined_call_operand.vmem [shape: f32[8,16], index: 10, kind: input, shape index: {}]
  %s11 = inlined_call_operand.vmem [shape: f32[8,1], index: 11, kind: input, shape index: {}]
  %s12 = inlined_call_operand.hbm [shape: f32[2,8,256], index: 12, kind: output, shape index: {}]
  %s13 = sld [smem:[#allocation0]]
  $region81: #{tpu_custom_call.1} parent=0
    _
  %s15 = ssub.s32 1, %s13
  %s16 = scalar_select 0, %s15, %s13
  %v17 = vstv %s7
  %18 = vst [vmem:[#allocation2] sm:$0x1] %v17
  $region1: #{tpu_custom_call.1} parent=0
    #allocation3 [shape = 'u8[16384]{0}', space=vmem, size = 0x4000, scoped, tag = 'output window, operand 0']
    #allocation4 [shape = 's32[2]{0}', space=sflag, size = 0x8, scoped, tag = 'scoped memory for tpu_custom_call.1']
    %19 = vsyncpa [#allocation4], 0
    %s20 = scalar_lea.sflag [#allocation4], 1
    %21 = vsyncpa %s20, 0
    loop: start=0, step=1, limit=4
    $region2: #{tpu_custom_call.1} parent=1 // loop_pre_header
      _
    $region3: #{tpu_custom_call.1} parent=1 // loop_header
      %s23 = sphi 0, %s27
      %p24 = scmp.ge.s32.totalorder %s23, 4
      %s33 = sphi 0, %s35
      %s36 = sphi 0, %s33
      %s37 = sphi 0, %s36
      %s53 = sphi 0, %s37
      %s57 = sphi 0, %s57
      %s59 = sphi 0, %s57
      %s60 = sphi 0, %s59
      %s74 = sphi 0, %s60
      %s78 = sphi 0, %s78
      %s80 = sphi 0, %s78
      %s81 = sphi 0, %s80
      %s95 = sphi 0, %s81
      %s99 = sphi 0, %s99
      %s101 = sphi 0, %s99
      %s102 = sphi 0, %s101
      %s116 = sphi 0, %s102
      %s120 = sphi 0, %s120
      %s122 = sphi 0, %s120
      %s123 = sphi 0, %s122
      %s137 = sphi 0, %s123
      %s141 = sphi 0, %s141
      %s143 = sphi 0, %s141
      %s144 = sphi 0, %s143
      %s158 = sphi 0, %s144
      %s162 = sphi 0, %s162
      %s164 = sphi 0, %s162
      %s165 = sphi 0, %s164
      %s179 = sphi 0, %s165
      %s183 = sphi 0, %s183
      %s185 = sphi 0, %s183
      %s186 = sphi 0, %s185
      %s200 = sphi 0, %s186
      %s204 = sphi 0, %s204
      %s206 = sphi 0, %s204
      %s207 = sphi 0, %s206
      %s221 = sphi 0, %s207
      %s225 = sphi 0, %s225
      %s227 = sphi 0, %s225
      %s228 = sphi 0, %s227
      %s242 = sphi 0, %s228
      %s246 = sphi 0, %s246
      %s248 = sphi 0, %s246
      %s249 = sphi 0, %s248
      %s263 = sphi 0, %s249
      %s267 = sphi 0, %s267
      %s269 = sphi 0, %s267
      %s270 = sphi 0, %s269
      %s284 = sphi 0, %s270
      %s290 = sphi 0, %s292
      %s293 = sphi 0, %s290
      %s294 = sphi 0, %s293
      %s310 = sphi 0, %s294
    $region4: #{tpu_custom_call.1} parent=1 // loop_header_branch
      %26 = sbr.rel (%p24) target = $region8
    $region5: #{tpu_custom_call.1} parent=1 // loop_body
      %s28 = ssub.s32 %s23, 1
      %s29 = ssub.s32 %s23, 2
      %s30 = sadd.s32 %s23, 1
      %s31 = ssub.s32 %s23, %s30
      %p32 = scmp.eq.s32.totalorder %s31, 0
      %s34 = sadd.s32 %s33, 1
      %s35 = scalar_select %p32, %s33, %s34
      %p38 = pneg %p32
      %p39 = scmp.eq.s32.totalorder %s23, 1
      %p40 = por %p38, %p39
      %p41 = scmp.ne.s32.totalorder %s33, %s36
      %p42 = scmp.eq.s32.totalorder %s23, 0
      %p43 = por %p41, %p42
      %p44 = scmp.ne.s32.totalorder %s33, %s36
      %p45 = scmp.eq.s32.totalorder %s28, 1
      %p46 = por %p44, %p45
      %p47 = scmp.ne.s32.totalorder %s36, %s37
      %p48 = scmp.eq.s32.totalorder %s28, 0
      %p49 = por %p47, %p48
      %p50 = scmp.ne.s32.totalorder %s36, %s37
      %p51 = scmp.eq.s32.totalorder %s29, 1
      %p52 = por %p50, %p51
      %p54 = scmp.ne.s32.totalorder %s37, %s53
      %p55 = scmp.eq.s32.totalorder %s29, 0
      %p56 = por %p54, %p55
      %s58 = sadd.s32 %s57, 1
      %p61 = scmp.eq.s32.totalorder %s23, 1
      %p62 = scmp.ne.s32.totalorder %s57, %s59
      %p63 = scmp.eq.s32.totalorder %s23, 0
      %p64 = por %p62, %p63
      %p65 = scmp.ne.s32.totalorder %s57, %s59
      %p66 = scmp.eq.s32.totalorder %s28, 1
      %p67 = por %p65, %p66
      %p68 = scmp.ne.s32.totalorder %s59, %s60
      %p69 = scmp.eq.s32.totalorder %s28, 0
      %p70 = por %p68, %p69
      %p71 = scmp.ne.s32.totalorder %s59, %s60
      %p72 = scmp.eq.s32.totalorder %s29, 1
      %p73 = por %p71, %p72
      %p75 = scmp.ne.s32.totalorder %s60, %s74
      %p76 = scmp.eq.s32.totalorder %s29, 0
      %p77 = por %p75, %p76
      %s79 = sadd.s32 %s78, 1
      %p82 = scmp.eq.s32.totalorder %s23, 1
      %p83 = scmp.ne.s32.totalorder %s78, %s80
      %p84 = scmp.eq.s32.totalorder %s23, 0
      %p85 = por %p83, %p84
      %p86 = scmp.ne.s32.totalorder %s78, %s80
      %p87 = scmp.eq.s32.totalorder %s28, 1
      %p88 = por %p86, %p87
      %p89 = scmp.ne.s32.totalorder %s80, %s81
      %p90 = scmp.eq.s32.totalorder %s28, 0
      %p91 = por %p89, %p90
      %p92 = scmp.ne.s32.totalorder %s80, %s81
      %p93 = scmp.eq.s32.totalorder %s29, 1
      %p94 = por %p92, %p93
      %p96 = scmp.ne.s32.totalorder %s81, %s95
      %p97 = scmp.eq.s32.totalorder %s29, 0
      %p98 = por %p96, %p97
      %s100 = sadd.s32 %s99, 1
      %p103 = scmp.eq.s32.totalorder %s23, 1
      %p104 = scmp.ne.s32.totalorder %s99, %s101
      %p105 = scmp.eq.s32.totalorder %s23, 0
      %p106 = por %p104, %p105
      %p107 = scmp.ne.s32.totalorder %s99, %s101
      %p108 = scmp.eq.s32.totalorder %s28, 1
      %p109 = por %p107, %p108
      %p110 = scmp.ne.s32.totalorder %s101, %s102
      %p111 = scmp.eq.s32.totalorder %s28, 0
      %p112 = por %p110, %p111
      %p113 = scmp.ne.s32.totalorder %s101, %s102
      %p114 = scmp.eq.s32.totalorder %s29, 1
      %p115 = por %p113, %p114
      %p117 = scmp.ne.s32.totalorder %s102, %s116
      %p118 = scmp.eq.s32.totalorder %s29, 0
      %p119 = por %p117, %p118
      %s121 = sadd.s32 %s120, 1
      %p124 = scmp.eq.s32.totalorder %s23, 1
      %p125 = scmp.ne.s32.totalorder %s120, %s122
      %p126 = scmp.eq.s32.totalorder %s23, 0
      %p127 = por %p125, %p126
      %p128 = scmp.ne.s32.totalorder %s120, %s122
      %p129 = scmp.eq.s32.totalorder %s28, 1
      %p130 = por %p128, %p129
      %p131 = scmp.ne.s32.totalorder %s122, %s123
      %p132 = scmp.eq.s32.totalorder %s28, 0
      %p133 = por %p131, %p132
      %p134 = scmp.ne.s32.totalorder %s122, %s123
      %p135 = scmp.eq.s32.totalorder %s29, 1
      %p136 = por %p134, %p135
      %p138 = scmp.ne.s32.totalorder %s123, %s137
      %p139 = scmp.eq.s32.totalorder %s29, 0
      %p140 = por %p138, %p139
      %s142 = sadd.s32 %s141, 1
      %p145 = scmp.eq.s32.totalorder %s23, 1
      %p146 = scmp.ne.s32.totalorder %s141, %s143
      %p147 = scmp.eq.s32.totalorder %s23, 0
      %p148 = por %p146, %p147
      %p149 = scmp.ne.s32.totalorder %s141, %s143
      %p150 = scmp.eq.s32.totalorder %s28, 1
      %p151 = por %p149, %p150
      %p152 = scmp.ne.s32.totalorder %s143, %s144
      %p153 = scmp.eq.s32.totalorder %s28, 0
      %p154 = por %p152, %p153
      %p155 = scmp.ne.s32.totalorder %s143, %s144
      %p156 = scmp.eq.s32.totalorder %s29, 1
      %p157 = por %p155, %p156
      %p159 = scmp.ne.s32.totalorder %s144, %s158
      %p160 = scmp.eq.s32.totalorder %s29, 0
      %p161 = por %p159, %p160
      %s163 = sadd.s32 %s162, 1
      %p166 = scmp.eq.s32.totalorder %s23, 1
      %p167 = scmp.ne.s32.totalorder %s162, %s164
      %p168 = scmp.eq.s32.totalorder %s23, 0
      %p169 = por %p167, %p168
      %p170 = scmp.ne.s32.totalorder %s162, %s164
      %p171 = scmp.eq.s32.totalorder %s28, 1
      %p172 = por %p170, %p171
      %p173 = scmp.ne.s32.totalorder %s164, %s165
      %p174 = scmp.eq.s32.totalorder %s28, 0
      %p175 = por %p173, %p174
      %p176 = scmp.ne.s32.totalorder %s164, %s165
      %p177 = scmp.eq.s32.totalorder %s29, 1
      %p178 = por %p176, %p177
      %p180 = scmp.ne.s32.totalorder %s165, %s179
      %p181 = scmp.eq.s32.totalorder %s29, 0
      %p182 = por %p180, %p181
      %s184 = sadd.s32 %s183, 1
      %p187 = scmp.eq.s32.totalorder %s23, 1
      %p188 = scmp.ne.s32.totalorder %s183, %s185
      %p189 = scmp.eq.s32.totalorder %s23, 0
      %p190 = por %p188, %p189
      %p191 = scmp.ne.s32.totalorder %s183, %s185
      %p192 = scmp.eq.s32.totalorder %s28, 1
      %p193 = por %p191, %p192
      %p194 = scmp.ne.s32.totalorder %s185, %s186
      %p195 = scmp.eq.s32.totalorder %s28, 0
      %p196 = por %p194, %p195
      %p197 = scmp.ne.s32.totalorder %s185, %s186
      %p198 = scmp.eq.s32.totalorder %s29, 1
      %p199 = por %p197, %p198
      %p201 = scmp.ne.s32.totalorder %s186, %s200
      %p202 = scmp.eq.s32.totalorder %s29, 0
      %p203 = por %p201, %p202
      %s205 = sadd.s32 %s204, 1
      %p208 = scmp.eq.s32.totalorder %s23, 1
      %p209 = scmp.ne.s32.totalorder %s204, %s206
      %p210 = scmp.eq.s32.totalorder %s23, 0
      %p211 = por %p209, %p210
      %p212 = scmp.ne.s32.totalorder %s204, %s206
      %p213 = scmp.eq.s32.totalorder %s28, 1
      %p214 = por %p212, %p213
      %p215 = scmp.ne.s32.totalorder %s206, %s207
      %p216 = scmp.eq.s32.totalorder %s28, 0
      %p217 = por %p215, %p216
      %p218 = scmp.ne.s32.totalorder %s206, %s207
      %p219 = scmp.eq.s32.totalorder %s29, 1
      %p220 = por %p218, %p219
      %p222 = scmp.ne.s32.totalorder %s207, %s221
      %p223 = scmp.eq.s32.totalorder %s29, 0
      %p224 = por %p222, %p223
      %s226 = sadd.s32 %s225, 1
      %p229 = scmp.eq.s32.totalorder %s23, 1
      %p230 = scmp.ne.s32.totalorder %s225, %s227
      %p231 = scmp.eq.s32.totalorder %s23, 0
      %p232 = por %p230, %p231
      %p233 = scmp.ne.s32.totalorder %s225, %s227
      %p234 = scmp.eq.s32.totalorder %s28, 1
      %p235 = por %p233, %p234
      %p236 = scmp.ne.s32.totalorder %s227, %s228
      %p237 = scmp.eq.s32.totalorder %s28, 0
      %p238 = por %p236, %p237
      %p239 = scmp.ne.s32.totalorder %s227, %s228
      %p240 = scmp.eq.s32.totalorder %s29, 1
      %p241 = por %p239, %p240
      %p243 = scmp.ne.s32.totalorder %s228, %s242
      %p244 = scmp.eq.s32.totalorder %s29, 0
      %p245 = por %p243, %p244
      %s247 = sadd.s32 %s246, 1
      %p250 = scmp.eq.s32.totalorder %s23, 1
      %p251 = scmp.ne.s32.totalorder %s246, %s248
      %p252 = scmp.eq.s32.totalorder %s23, 0
      %p253 = por %p251, %p252
      %p254 = scmp.ne.s32.totalorder %s246, %s248
      %p255 = scmp.eq.s32.totalorder %s28, 1
      %p256 = por %p254, %p255
      %p257 = scmp.ne.s32.totalorder %s248, %s249
      %p258 = scmp.eq.s32.totalorder %s28, 0
      %p259 = por %p257, %p258
      %p260 = scmp.ne.s32.totalorder %s248, %s249
      %p261 = scmp.eq.s32.totalorder %s29, 1
      %p262 = por %p260, %p261
      %p264 = scmp.ne.s32.totalorder %s249, %s263
      %p265 = scmp.eq.s32.totalorder %s29, 0
      %p266 = por %p264, %p265
      %s268 = sadd.s32 %s267, 1
      %p271 = scmp.eq.s32.totalorder %s23, 1
      %p272 = scmp.ne.s32.totalorder %s267, %s269
      %p273 = scmp.eq.s32.totalorder %s23, 0
      %p274 = por %p272, %p273
      %p275 = scmp.ne.s32.totalorder %s267, %s269
      %p276 = scmp.eq.s32.totalorder %s28, 1
      %p277 = por %p275, %p276
      %p278 = scmp.ne.s32.totalorder %s269, %s270
      %p279 = scmp.eq.s32.totalorder %s28, 0
      %p280 = por %p278, %p279
      %p281 = scmp.ne.s32.totalorder %s269, %s270
      %p282 = scmp.eq.s32.totalorder %s29, 1
      %p283 = por %p281, %p282
      %p285 = scmp.ne.s32.totalorder %s270, %s284
      %p286 = scmp.eq.s32.totalorder %s29, 0
      %p287 = por %p285, %p286
      %s288 = ssub.s32 %s23, %s30
      %p289 = scmp.eq.s32.totalorder %s288, 0
      %s291 = sadd.s32 %s290, 1
      %s292 = scalar_select %p289, %s290, %s291
      %p295 = pneg %p289
      %p296 = scmp.eq.s32.totalorder %s23, 1
      %p297 = por %p295, %p296
      %p298 = scmp.ne.s32.totalorder %s290, %s293
      %p299 = scmp.eq.s32.totalorder %s23, 0
      %p300 = por %p298, %p299
      %p301 = scmp.ne.s32.totalorder %s290, %s293
      %p302 = scmp.eq.s32.totalorder %s28, 1
      %p303 = por %p301, %p302
      %p304 = scmp.ne.s32.totalorder %s293, %s294
      %p305 = scmp.eq.s32.totalorder %s28, 0
      %p306 = por %p304, %p305
      %p307 = scmp.ne.s32.totalorder %s293, %s294
      %p308 = scmp.eq.s32.totalorder %s29, 1
      %p309 = por %p307, %p308
      %p311 = scmp.ne.s32.totalorder %s294, %s310
      %p312 = scmp.eq.s32.totalorder %s29, 0
      %p313 = por %p311, %p312
      %p314 = scmp.le.s32.totalorder 1, %s23
      %p315 = scmp.lt.s32.totalorder %s23, 3
      %p316 = pnand %p314, %p315
      %p317 = pneg %p316
      // Predicated region
      $region9: #{tpu_custom_call.1} parent=5 // pred_check
        _
      $region10: #{tpu_custom_call.1} parent=5 // pred_check_branch
        %319 = sbr.rel (%p316) target = $region12
      $region11: #{tpu_custom_call.1} parent=5 // pred_region
        %s320 = ssub.s32 %s23, 1
        // Predicated region
        $region13: #{tpu_custom_call.1} parent=11 // pred_check
          %p321 = pneg %p70
        $region14: #{tpu_custom_call.1} parent=11 // pred_check_branch
          %323 = sbr.rel (%p321) target = $region16
        $region15: #{tpu_custom_call.1} parent=11 // pred_region
          _
        $region16: #{tpu_custom_call.1} parent=11 // pred_fallthru
          _
        // Predicated region
        $region17: #{tpu_custom_call.1} parent=11 // pred_check
          %p324 = pneg %p91
        $region18: #{tpu_custom_call.1} parent=11 // pred_check_branch
          %326 = sbr.rel (%p324) target = $region20
        $region19: #{tpu_custom_call.1} parent=11 // pred_region
          _
        $region20: #{tpu_custom_call.1} parent=11 // pred_fallthru
          _
        // Predicated region
        $region21: #{tpu_custom_call.1} parent=11 // pred_check
          %p327 = pneg %p112
        $region22: #{tpu_custom_call.1} parent=11 // pred_check_branch
          %329 = sbr.rel (%p327) target = $region24
        $region23: #{tpu_custom_call.1} parent=11 // pred_region
          _
        $region24: #{tpu_custom_call.1} parent=11 // pred_fallthru
          _
        // Predicated region
        $region25: #{tpu_custom_call.1} parent=11 // pred_check
          %p330 = pneg %p133
        $region26: #{tpu_custom_call.1} parent=11 // pred_check_branch
          %332 = sbr.rel (%p330) target = $region28
        $region27: #{tpu_custom_call.1} parent=11 // pred_region
          _
        $region28: #{tpu_custom_call.1} parent=11 // pred_fallthru
          _
        // Predicated region
        $region29: #{tpu_custom_call.1} parent=11 // pred_check
          %p333 = pneg %p154
        $region30: #{tpu_custom_call.1} parent=11 // pred_check_branch
          %335 = sbr.rel (%p333) target = $region32
        $region31: #{tpu_custom_call.1} parent=11 // pred_region
          _
        $region32: #{tpu_custom_call.1} parent=11 // pred_fallthru
          _
        // Predicated region
        $region33: #{tpu_custom_call.1} parent=11 // pred_check
          %p336 = pneg %p175
        $region34: #{tpu_custom_call.1} parent=11 // pred_check_branch
          %338 = sbr.rel (%p336) target = $region36
        $region35: #{tpu_custom_call.1} parent=11 // pred_region
          _
        $region36: #{tpu_custom_call.1} parent=11 // pred_fallthru
          _
        // Predicated region
        $region37: #{tpu_custom_call.1} parent=11 // pred_check
          %p339 = pneg %p196
        $region38: #{tpu_custom_call.1} parent=11 // pred_check_branch
          %341 = sbr.rel (%p339) target = $region40
        $region39: #{tpu_custom_call.1} parent=11 // pred_region
          _
        $region40: #{tpu_custom_call.1} parent=11 // pred_fallthru
          _
        // Predicated region
        $region41: #{tpu_custom_call.1} parent=11 // pred_check
          %p342 = pneg %p217
        $region42: #{tpu_custom_call.1} parent=11 // pred_check_branch
          %344 = sbr.rel (%p342) target = $region44
        $region43: #{tpu_custom_call.1} parent=11 // pred_region
          _
        $region44: #{tpu_custom_call.1} parent=11 // pred_fallthru
          _
        // Predicated region
        $region45: #{tpu_custom_call.1} parent=11 // pred_check
          %p345 = pneg %p238
        $region46: #{tpu_custom_call.1} parent=11 // pred_check_branch
          %347 = sbr.rel (%p345) target = $region48
        $region47: #{tpu_custom_call.1} parent=11 // pred_region
          _
        $region48: #{tpu_custom_call.1} parent=11 // pred_fallthru
          _
        // Predicated region
        $region49: #{tpu_custom_call.1} parent=11 // pred_check
          %p348 = pneg %p259
        $region50: #{tpu_custom_call.1} parent=11 // pred_check_branch
          %350 = sbr.rel (%p348) target = $region52
        $region51: #{tpu_custom_call.1} parent=11 // pred_region
          _
        $region52: #{tpu_custom_call.1} parent=11 // pred_fallthru
          _
        // Predicated region
        $region53: #{tpu_custom_call.1} parent=11 // pred_check
          %p351 = pneg %p280
        $region54: #{tpu_custom_call.1} parent=11 // pred_check_branch
          %353 = sbr.rel (%p351) target = $region56
        $region55: #{tpu_custom_call.1} parent=11 // pred_region
          _
        $region56: #{tpu_custom_call.1} parent=11 // pred_fallthru
          _
      $region12: #{tpu_custom_call.1} parent=5 // pred_fallthru
        _
      %p354 = scmp.lt.s32.totalorder %s23, 2
      // Predicated region
      $region57: #{tpu_custom_call.1} parent=5 // pred_check
        %p355 = pneg %p354
      $region58: #{tpu_custom_call.1} parent=5 // pred_check_branch
        %357 = sbr.rel (%p355) target = $region60
      $region59: #{tpu_custom_call.1} parent=5 // pred_region
        // Predicated region
        $region61: #{tpu_custom_call.1} parent=59 // pred_check
          %p358 = pneg %p43
        $region62: #{tpu_custom_call.1} parent=59 // pred_check_branch
          %360 = sbr.rel (%p358) target = $region64
        $region63: #{tpu_custom_call.1} parent=59 // pred_region
          %p361 = scmp.lt.s32.totalorder %s23, 1
          %s362 = scalar_select %p361, %s23, 1
          %s363 = smul.addr %s362, 2
          %s364 = smul.addr %s363, 4
          %s365 = scalar_lea.vmem %s0, %s364
        $region64: #{tpu_custom_call.1} parent=59 // pred_fallthru
          _
      $region60: #{tpu_custom_call.1} parent=5 // pred_fallthru
        _
      %p366 = scmp.le.s32.totalorder 1, %s23
      %p367 = scmp.lt.s32.totalorder %s23, 3
      %p368 = pnand %p366, %p367
      %p369 = pneg %p368
      // Predicated region
      $region65: #{tpu_custom_call.1} parent=5 // pred_check
        _
      $region66: #{tpu_custom_call.1} parent=5 // pred_check_branch
        %371 = sbr.rel (%p368) target = $region68
      $region67: #{tpu_custom_call.1} parent=5 // pred_region
        %s372 = ssub.s32 %s23, 1
        %p373 = scmp.lt.s32.totalorder %s28, 1
        %s374 = scalar_select %p373, %s28, 1
        %s375 = smul.addr %s374, 2
        %s376 = smul.addr %s375, 4
        %s377 = scalar_lea.vmem %s0, %s376
        %p378 = pneg %p49
        %p379 = pneg %p46
        %p380 = pneg %p70
        %p381 = pneg %p67
        %p382 = pneg %p91
        %p383 = pneg %p88
        %p384 = pneg %p112
        %p385 = pneg %p109
        %p386 = pneg %p133
        %p387 = pneg %p130
        %p388 = pneg %p154
        %p389 = pneg %p151
        %p390 = pneg %p175
        %p391 = pneg %p172
        %p392 = pneg %p196
        %p393 = pneg %p193
        %p394 = pneg %p217
        %p395 = pneg %p214
        %p396 = pneg %p238
        %p397 = pneg %p235
        %p398 = pneg %p259
        %p399 = pneg %p256
        %p400 = pneg %p280
        %p401 = pneg %p277
        %p402 = pneg %p306
        %p403 = pneg %p303
        %s404 = sand.u32 %s293, 1
        %s405 = scalar_lea.sflag [#allocation4], %s404
        %s406 = sand.u32 %s293, 1
        %s407 = smul.addr %s406, 16
        %s408 = scalar_lea.vmem [#allocation3], %s407
        %p409 = scmp.lt.s32.totalorder %s28, 1
        %s410 = scalar_select %p409, %s28, 1
        %s411 = smul.addr %s410, 2
        %s412 = smul.addr %s411, 4
        %s413 = scalar_lea.vmem %s0, %s412
        %v414 = vld [vmem:[%s1] sm:$0xff]
        %v415 = vld [vmem:[%s1 + $0x8] sm:$0xff]
        %v416 = vld [vmem:[%s2] sm:$0xff]
        %v417 = vld [vmem:[%s2 + $0x8] sm:$0xff]
        %v418 = vld [vmem:[%s3] sm:$0xff]
        %v419 = vld [vmem:[%s3 + $0x8] sm:$0xff]
        %v420 = vld [vmem:[%s4] sm:$0xff]
        %v421 = vld [vmem:[%s4 + $0x8] sm:$0xff]
        %v422 = vld [vmem:[%s6] sm:$0xff]
        %v423 = vld [vmem:[%s6 + $0x8] sm:$0xff]
        %v424 = vld [vmem:[#allocation2] sm:$0x1]
        %v425 = vld [vmem:[%s8] sm:$0xff]
        %v426 = vld [vmem:[%s8 + $0x8] sm:$0xff]
        %v427 = vld [vmem:[%s9] sm:$0xff]
        %v428 = vld [vmem:[%s9 + $0x8] sm:$0xff]
        %v429 = vld [vmem:[%s10] sm:$0xff]
        %v430 = vld [vmem:[%s11] sm:$0xff]
        %v431 = vld [vmem:[%s413] sm:$0xff]
        %433 = vset.pattern.permute.xlu0 0
        %434 = vperm.xlu0 %433, %v416
        %v435 = vpop.permute.xlu0 %434
        %438 = vset.pattern.permute.xlu0 0
        %439 = vperm.xlu0 %438, %v417
        %v440 = vpop.permute.xlu0 %439
        %443 = vset.pattern.permute.xlu0 0
        %444 = vperm.xlu0 %443, %v414
        %v445 = vpop.permute.xlu0 %444
        %448 = vset.pattern.permute.xlu0 0
        %449 = vperm.xlu0 %448, %v415
        %v450 = vpop.permute.xlu0 %449
        %v453 = vlaneseq
        %v454 = vshrl.u32 %v453, 7
        %v455 = vsub.s32 0, %v454
        %v456 = vrot.slane %v431, %v455
        %v457 = vlaneseq
        %v458 = vshrl.u32 %v457, 7
        %v459 = vsub.s32 4, %v458
        %v460 = vrot.slane %v431, %v459
        %v463 = vlaneseq
        %v464 = vshrl.u32 %v463, 7
        %v465 = vsub.s32 0, %v464
        %v466 = vrot.slane %v456, %v465
        %v467 = vlaneseq
        %v468 = vshrl.u32 %v467, 7
        %v469 = vsub.s32 0, %v468
        %v470 = vrot.slane %v460, %v469
        %v471 = vmul.f32 %v445, %v466
        %v472 = vmul.f32 %v445, %v470
        %v473 = vmul.f32 %v450, %v466
        %v474 = vmul.f32 %v450, %v470
        %v475 = vadd.f32 %v435, %v471
        %v476 = vadd.f32 %v435, %v472
        %v477 = vadd.f32 %v440, %v473
        %v478 = vadd.f32 %v440, %v474
        %479 = vset.pattern.permute.xlu0 1
        %480 = vperm.xlu0 %479, %v414
        %v481 = vpop.permute.xlu0 %480
        %483 = vset.pattern.permute.xlu0 1
        %484 = vperm.xlu0 %483, %v415
        %v485 = vpop.permute.xlu0 %484
        %v487 = vlaneseq
        %v488 = vshrl.u32 %v487, 7
        %v489 = vsub.s32 1, %v488
        %v490 = vrot.slane %v431, %v489
        %v491 = vlaneseq
        %v492 = vshrl.u32 %v491, 7
        %v493 = vsub.s32 5, %v492
        %v494 = vrot.slane %v431, %v493
        %v497 = vlaneseq
        %v498 = vshrl.u32 %v497, 7
        %v499 = vsub.s32 1, %v498
        %v500 = vrot.slane %v490, %v499
        %v501 = vlaneseq
        %v502 = vshrl.u32 %v501, 7
        %v503 = vsub.s32 1, %v502
        %v504 = vrot.slane %v494, %v503
        %v505 = vmul.f32 %v481, %v500
        %v506 = vmul.f32 %v481, %v504
        %v507 = vmul.f32 %v485, %v500
        %v508 = vmul.f32 %v485, %v504
        %v509 = vadd.f32 %v475, %v505
        %v510 = vadd.f32 %v476, %v506
        %v511 = vadd.f32 %v477, %v507
        %v512 = vadd.f32 %v478, %v508
        %513 = vset.pattern.permute.xlu0 2
        %514 = vperm.xlu0 %513, %v414
        %v515 = vpop.permute.xlu0 %514
        %517 = vset.pattern.permute.xlu0 2
        %518 = vperm.xlu0 %517, %v415
        %v519 = vpop.permute.xlu0 %518
        %v521 = vlaneseq
        %v522 = vshrl.u32 %v521, 7
        %v523 = vsub.s32 2, %v522
        %v524 = vrot.slane %v431, %v523
        %v525 = vlaneseq
        %v526 = vshrl.u32 %v525, 7
        %v527 = vsub.s32 6, %v526
        %v528 = vrot.slane %v431, %v527
        %v531 = vlaneseq
        %v532 = vshrl.u32 %v531, 7
        %v533 = vsub.s32 2, %v532
        %v534 = vrot.slane %v524, %v533
        %v535 = vlaneseq
        %v536 = vshrl.u32 %v535, 7
        %v537 = vsub.s32 2, %v536
        %v538 = vrot.slane %v528, %v537
        %v539 = vmul.f32 %v515, %v534
        %v540 = vmul.f32 %v515, %v538
        %v541 = vmul.f32 %v519, %v534
        %v542 = vmul.f32 %v519, %v538
        %v543 = vadd.f32 %v509, %v539
        %v544 = vadd.f32 %v510, %v540
        %v545 = vadd.f32 %v511, %v541
        %v546 = vadd.f32 %v512, %v542
        %547 = vset.pattern.permute.xlu0 3
        %548 = vperm.xlu0 %547, %v414
        %v549 = vpop.permute.xlu0 %548
        %551 = vset.pattern.permute.xlu0 3
        %552 = vperm.xlu0 %551, %v415
        %v553 = vpop.permute.xlu0 %552
        %v555 = vlaneseq
        %v556 = vshrl.u32 %v555, 7
        %v557 = vsub.s32 3, %v556
        %v558 = vrot.slane %v431, %v557
        %v559 = vlaneseq
        %v560 = vshrl.u32 %v559, 7
        %v561 = vsub.s32 7, %v560
        %v562 = vrot.slane %v431, %v561
        %v565 = vlaneseq
        %v566 = vshrl.u32 %v565, 7
        %v567 = vsub.s32 3, %v566
        %v568 = vrot.slane %v558, %v567
        %v569 = vlaneseq
        %v570 = vshrl.u32 %v569, 7
        %v571 = vsub.s32 3, %v570
        %v572 = vrot.slane %v562, %v571
        %v573 = vmul.f32 %v549, %v568
        %v574 = vmul.f32 %v549, %v572
        %v575 = vmul.f32 %v553, %v568
        %v576 = vmul.f32 %v553, %v572
        %v577 = vadd.f32 %v543, %v573
        %v578 = vadd.f32 %v544, %v574
        %v579 = vadd.f32 %v545, %v575
        %v580 = vadd.f32 %v546, %v576
        %v581 = vxor.u32 %v577, 2147483648
        %v582 = vxor.u32 %v578, 2147483648
        %v583 = vxor.u32 %v579, 2147483648
        %v584 = vxor.u32 %v580, 2147483648
        %v585 = vmul.f32 %v581, 1.442695
        %v586 = vpow.pop %v585
        %v587 = vmul.f32 %v582, 1.442695
        %v588 = vpow.pop %v587
        %v589 = vmul.f32 %v583, 1.442695
        %v590 = vpow.pop %v589
        %v591 = vmul.f32 %v584, 1.442695
        %v592 = vpow.pop %v591
        %v593 = vadd.f32 %v586, 1.0
        %v594 = vadd.f32 %v588, 1.0
        %v595 = vadd.f32 %v590, 1.0
        %v596 = vadd.f32 %v592, 1.0
        %v597 = vrcp.pop %v593
        %v598 = vmul.f32 1.0, %v597
        %v599 = vrcp.pop %v594
        %v600 = vmul.f32 1.0, %v599
        %v601 = vrcp.pop %v595
        %v602 = vmul.f32 1.0, %v601
        %v603 = vrcp.pop %v596
        %v604 = vmul.f32 1.0, %v603
        %v605 = vmul.f32 %v577, %v598
        %v606 = vmul.f32 %v578, %v600
        %v607 = vmul.f32 %v579, %v602
        %v608 = vmul.f32 %v580, %v604
        %610 = vset.pattern.permute.xlu0 0
        %611 = vperm.xlu0 %610, %v420
        %v612 = vpop.permute.xlu0 %611
        %615 = vset.pattern.permute.xlu0 0
        %616 = vperm.xlu0 %615, %v421
        %v617 = vpop.permute.xlu0 %616
        %619 = vrot.lane.b32.xlu0 %v605, 17
        %v620 = vpop.permute.xlu0 %619
        %621 = vrot.lane.b32.xlu0 %v607, 17
        %v622 = vpop.permute.xlu0 %621
        %623 = vrot.lane.b32.xlu0 %v606, 17
        %v624 = vpop.permute.xlu0 %623
        %625 = vrot.lane.b32.xlu0 %v608, 17
        %v626 = vpop.permute.xlu0 %625
        %v627 = vlaneseq
        %v628 = vand.u32 %v627, 127
        %vm629 = vcmp.lt.s32.totalorder %v628, 17
        %v630 = vsel %vm629, %v620, %v624
        %v631 = vsel %vm629, %v622, %v626
        %v632 = vsel %vm629, %v624, %v620
        %v633 = vsel %vm629, %v626, %v622
        %v634 = vld [vmem:[%s5] ss:$8 sm:$0x3]
        %v636 = vlaneseq
        %v637 = vshrl.u32 %v636, 7
        %v638 = vsub.s32 0, %v637
        %v639 = vrot.slane %v634, %v638
        %v640 = vlaneseq
        %v641 = vshrl.u32 %v640, 7
        %v642 = vsub.s32 1, %v641
        %v643 = vrot.slane %v634, %v642
        %v646 = vmul.f32 %v632, %v639
        %v647 = vmul.f32 %v630, %v643
        %v648 = vmul.f32 %v633, %v639
        %v649 = vmul.f32 %v631, %v643
        %651 = vset.pattern.permute.xlu0 0
        %652 = vperm.xlu0 %651, %v418
        %v653 = vpop.permute.xlu0 %652
        %656 = vset.pattern.permute.xlu0 0
        %657 = vperm.xlu0 %656, %v419
        %v658 = vpop.permute.xlu0 %657
        %v660 = vmul.f32 %v646, %v653
        %v661 = vmul.f32 %v647, %v653
        %v662 = vmul.f32 %v648, %v658
        %v663 = vmul.f32 %v649, %v658
        %v664 = vadd.f32 %v612, %v660
        %v665 = vadd.f32 %v612, %v661
        %v666 = vadd.f32 %v617, %v662
        %v667 = vadd.f32 %v617, %v663
        %668 = vrot.lane.b32.xlu0 %v605, 16
        %v669 = vpop.permute.xlu0 %668
        %670 = vrot.lane.b32.xlu0 %v607, 16
        %v671 = vpop.permute.xlu0 %670
        %672 = vrot.lane.b32.xlu0 %v606, 16
        %v673 = vpop.permute.xlu0 %672
        %674 = vrot.lane.b32.xlu0 %v608, 16
        %v675 = vpop.permute.xlu0 %674
        %vm676 = vcmp.lt.s32.totalorder %v628, 16
        %v677 = vsel %vm676, %v669, %v673
        %v678 = vsel %vm676, %v671, %v675
        %v679 = vsel %vm676, %v673, %v669
        %v680 = vsel %vm676, %v675, %v671
        %s681 = scalar_lea.vmem %s5, 1
        %v682 = vld [vmem:[%s681] ss:$8 sm:$0x3]
        %v684 = vlaneseq
        %v685 = vshrl.u32 %v684, 7
        %v686 = vsub.s32 0, %v685
        %v687 = vrot.slane %v682, %v686
        %v688 = vlaneseq
        %v689 = vshrl.u32 %v688, 7
        %v690 = vsub.s32 1, %v689
        %v691 = vrot.slane %v682, %v690
        %v694 = vmul.f32 %v679, %v687
        %v695 = vmul.f32 %v677, %v691
        %v696 = vmul.f32 %v680, %v687
        %v697 = vmul.f32 %v678, %v691
        %698 = vset.pattern.permute.xlu0 1
        %699 = vperm.xlu0 %698, %v418
        %v700 = vpop.permute.xlu0 %699
        %702 = vset.pattern.permute.xlu0 1
        %703 = vperm.xlu0 %702, %v419
        %v704 = vpop.permute.xlu0 %703
        %v706 = vmul.f32 %v694, %v700
        %v707 = vmul.f32 %v695, %v700
        %v708 = vmul.f32 %v696, %v704
        %v709 = vmul.f32 %v697, %v704
        %v710 = vadd.f32 %v664, %v706
        %v711 = vadd.f32 %v665, %v707
        %v712 = vadd.f32 %v666, %v708
        %v713 = vadd.f32 %v667, %v709
        %714 = vrot.lane.b32.xlu0 %v605, 15
        %v715 = vpop.permute.xlu0 %714
        %716 = vrot.lane.b32.xlu0 %v607, 15
        %v717 = vpop.permute.xlu0 %716
        %718 = vrot.lane.b32.xlu0 %v606, 15
        %v719 = vpop.permute.xlu0 %718
        %720 = vrot.lane.b32.xlu0 %v608, 15
        %v721 = vpop.permute.xlu0 %720
        %vm722 = vcmp.lt.s32.totalorder %v628, 15
        %v723 = vsel %vm722, %v715, %v719
        %v724 = vsel %vm722, %v717, %v721
        %v725 = vsel %vm722, %v719, %v715
        %v726 = vsel %vm722, %v721, %v717
        %s727 = scalar_lea.vmem %s5, 2
        %v728 = vld [vmem:[%s727] ss:$8 sm:$0x3]
        %v730 = vlaneseq
        %v731 = vshrl.u32 %v730, 7
        %v732 = vsub.s32 0, %v731
        %v733 = vrot.slane %v728, %v732
        %v734 = vlaneseq
        %v735 = vshrl.u32 %v734, 7
        %v736 = vsub.s32 1, %v735
        %v737 = vrot.slane %v728, %v736
        %v740 = vmul.f32 %v725, %v733
        %v741 = vmul.f32 %v723, %v737
        %v742 = vmul.f32 %v726, %v733
        %v743 = vmul.f32 %v724, %v737
        %744 = vset.pattern.permute.xlu0 2
        %745 = vperm.xlu0 %744, %v418
        %v746 = vpop.permute.xlu0 %745
        %748 = vset.pattern.permute.xlu0 2
        %749 = vperm.xlu0 %748, %v419
        %v750 = vpop.permute.xlu0 %749
        %v752 = vmul.f32 %v740, %v746
        %v753 = vmul.f32 %v741, %v746
        %v754 = vmul.f32 %v742, %v750
        %v755 = vmul.f32 %v743, %v750
        %v756 = vadd.f32 %v710, %v752
        %v757 = vadd.f32 %v711, %v753
        %v758 = vadd.f32 %v712, %v754
        %v759 = vadd.f32 %v713, %v755
        %760 = vrot.lane.b32.xlu0 %v605, 1
        %v761 = vpop.permute.xlu0 %760
        %762 = vrot.lane.b32.xlu0 %v607, 1
        %v763 = vpop.permute.xlu0 %762
        %764 = vrot.lane.b32.xlu0 %v606, 1
        %v765 = vpop.permute.xlu0 %764
        %766 = vrot.lane.b32.xlu0 %v608, 1
        %v767 = vpop.permute.xlu0 %766
        %vm768 = vcmp.lt.s32.totalorder %v628, 1
        %v769 = vsel %vm768, %v761, %v765
        %v770 = vsel %vm768, %v763, %v767
        %v771 = vsel %vm768, %v765, %v761
        %v772 = vsel %vm768, %v767, %v763
        %s773 = scalar_lea.vmem %s5, 3
        %v774 = vld [vmem:[%s773] ss:$8 sm:$0x3]
        %v776 = vlaneseq
        %v777 = vshrl.u32 %v776, 7
        %v778 = vsub.s32 0, %v777
        %v779 = vrot.slane %v774, %v778
        %v780 = vlaneseq
        %v781 = vshrl.u32 %v780, 7
        %v782 = vsub.s32 1, %v781
        %v783 = vrot.slane %v774, %v782
        %v786 = vmul.f32 %v771, %v779
        %v787 = vmul.f32 %v769, %v783
        %v788 = vmul.f32 %v772, %v779
        %v789 = vmul.f32 %v770, %v783
        %790 = vset.pattern.permute.xlu0 3
        %791 = vperm.xlu0 %790, %v418
        %v792 = vpop.permute.xlu0 %791
        %794 = vset.pattern.permute.xlu0 3
        %795 = vperm.xlu0 %794, %v419
        %v796 = vpop.permute.xlu0 %795
        %v798 = vmul.f32 %v786, %v792
        %v799 = vmul.f32 %v787, %v792
        %v800 = vmul.f32 %v788, %v796
        %v801 = vmul.f32 %v789, %v796
        %v802 = vadd.f32 %v756, %v798
        %v803 = vadd.f32 %v757, %v799
        %v804 = vadd.f32 %v758, %v800
        %v805 = vadd.f32 %v759, %v801
        %806 = vset.pattern.permute.xlu0 4
        %807 = vperm.xlu0 %806, %v418
        %v808 = vpop.permute.xlu0 %807
        %810 = vset.pattern.permute.xlu0 4
        %811 = vperm.xlu0 %810, %v419
        %v812 = vpop.permute.xlu0 %811
        %v814 = vmul.f32 %v605, %v808
        %v815 = vmul.f32 %v606, %v808
        %v816 = vmul.f32 %v607, %v812
        %v817 = vmul.f32 %v608, %v812
        %v818 = vadd.f32 %v802, %v814
        %v819 = vadd.f32 %v803, %v815
        %v820 = vadd.f32 %v804, %v816
        %v821 = vadd.f32 %v805, %v817
        %822 = vrot.lane.b32.xlu0 %v605, 127
        %v823 = vpop.permute.xlu0 %822
        %824 = vrot.lane.b32.xlu0 %v607, 127
        %v825 = vpop.permute.xlu0 %824
        %826 = vrot.lane.b32.xlu0 %v606, 127
        %v827 = vpop.permute.xlu0 %826
        %828 = vrot.lane.b32.xlu0 %v608, 127
        %v829 = vpop.permute.xlu0 %828
        %vm830 = vcmp.lt.s32.totalorder %v628, 127
        %v831 = vsel %vm830, %v823, %v827
        %v832 = vsel %vm830, %v825, %v829
        %v833 = vsel %vm830, %v827, %v823
        %v834 = vsel %vm830, %v829, %v825
        %s835 = scalar_lea.vmem %s5, 5
        %v836 = vld [vmem:[%s835] ss:$8 sm:$0x3]
        %v838 = vlaneseq
        %v839 = vshrl.u32 %v838, 7
        %v840 = vsub.s32 0, %v839
        %v841 = vrot.slane %v836, %v840
        %v842 = vlaneseq
        %v843 = vshrl.u32 %v842, 7
        %v844 = vsub.s32 1, %v843
        %v845 = vrot.slane %v836, %v844
        %v848 = vmul.f32 %v831, %v841
        %v849 = vmul.f32 %v833, %v845
        %v850 = vmul.f32 %v832, %v841
        %v851 = vmul.f32 %v834, %v845
        %852 = vset.pattern.permute.xlu0 5
        %853 = vperm.xlu0 %852, %v418
        %v854 = vpop.permute.xlu0 %853
        %856 = vset.pattern.permute.xlu0 5
        %857 = vperm.xlu0 %856, %v419
        %v858 = vpop.permute.xlu0 %857
        %v860 = vmul.f32 %v848, %v854
        %v861 = vmul.f32 %v849, %v854
        %v862 = vmul.f32 %v850, %v858
        %v863 = vmul.f32 %v851, %v858
        %v864 = vadd.f32 %v818, %v860
        %v865 = vadd.f32 %v819, %v861
        %v866 = vadd.f32 %v820, %v862
        %v867 = vadd.f32 %v821, %v863
        %868 = vrot.lane.b32.xlu0 %v605, 113
        %v869 = vpop.permute.xlu0 %868
        %870 = vrot.lane.b32.xlu0 %v607, 113
        %v871 = vpop.permute.xlu0 %870
        %872 = vrot.lane.b32.xlu0 %v606, 113
        %v873 = vpop.permute.xlu0 %872
        %874 = vrot.lane.b32.xlu0 %v608, 113
        %v875 = vpop.permute.xlu0 %874
        %vm876 = vcmp.lt.s32.totalorder %v628, 113
        %v877 = vsel %vm876, %v869, %v873
        %v878 = vsel %vm876, %v871, %v875
        %v879 = vsel %vm876, %v873, %v869
        %v880 = vsel %vm876, %v875, %v871
        %s881 = scalar_lea.vmem %s5, 6
        %v882 = vld [vmem:[%s881] ss:$8 sm:$0x3]
        %v884 = vlaneseq
        %v885 = vshrl.u32 %v884, 7
        %v886 = vsub.s32 0, %v885
        %v887 = vrot.slane %v882, %v886
        %v888 = vlaneseq
        %v889 = vshrl.u32 %v888, 7
        %v890 = vsub.s32 1, %v889
        %v891 = vrot.slane %v882, %v890
        %v894 = vmul.f32 %v877, %v887
        %v895 = vmul.f32 %v879, %v891
        %v896 = vmul.f32 %v878, %v887
        %v897 = vmul.f32 %v880, %v891
        %898 = vset.pattern.permute.xlu0 6
        %899 = vperm.xlu0 %898, %v418
        %v900 = vpop.permute.xlu0 %899
        %902 = vset.pattern.permute.xlu0 6
        %903 = vperm.xlu0 %902, %v419
        %v904 = vpop.permute.xlu0 %903
        %v906 = vmul.f32 %v894, %v900
        %v907 = vmul.f32 %v895, %v900
        %v908 = vmul.f32 %v896, %v904
        %v909 = vmul.f32 %v897, %v904
        %v910 = vadd.f32 %v864, %v906
        %v911 = vadd.f32 %v865, %v907
        %v912 = vadd.f32 %v866, %v908
        %v913 = vadd.f32 %v867, %v909
        %914 = vrot.lane.b32.xlu0 %v605, 112
        %v915 = vpop.permute.xlu0 %914
        %916 = vrot.lane.b32.xlu0 %v607, 112
        %v917 = vpop.permute.xlu0 %916
        %918 = vrot.lane.b32.xlu0 %v606, 112
        %v919 = vpop.permute.xlu0 %918
        %920 = vrot.lane.b32.xlu0 %v608, 112
        %v921 = vpop.permute.xlu0 %920
        %vm922 = vcmp.lt.s32.totalorder %v628, 112
        %v923 = vsel %vm922, %v915, %v919
        %v924 = vsel %vm922, %v917, %v921
        %v925 = vsel %vm922, %v919, %v915
        %v926 = vsel %vm922, %v921, %v917
        %s927 = scalar_lea.vmem %s5, 7
        %v928 = vld [vmem:[%s927] ss:$8 sm:$0x3]
        %v930 = vlaneseq
        %v931 = vshrl.u32 %v930, 7
        %v932 = vsub.s32 0, %v931
        %v933 = vrot.slane %v928, %v932
        %v934 = vlaneseq
        %v935 = vshrl.u32 %v934, 7
        %v936 = vsub.s32 1, %v935
        %v937 = vrot.slane %v928, %v936
        %v940 = vmul.f32 %v923, %v933
        %v941 = vmul.f32 %v925, %v937
        %v942 = vmul.f32 %v924, %v933
        %v943 = vmul.f32 %v926, %v937
        %944 = vset.pattern.permute.xlu0 7
        %945 = vperm.xlu0 %944, %v418
        %v946 = vpop.permute.xlu0 %945
        %948 = vset.pattern.permute.xlu0 7
        %949 = vperm.xlu0 %948, %v419
        %v950 = vpop.permute.xlu0 %949
        %v952 = vmul.f32 %v940, %v946
        %v953 = vmul.f32 %v941, %v946
        %v954 = vmul.f32 %v942, %v950
        %v955 = vmul.f32 %v943, %v950
        %v956 = vadd.f32 %v910, %v952
        %v957 = vadd.f32 %v911, %v953
        %v958 = vadd.f32 %v912, %v954
        %v959 = vadd.f32 %v913, %v955
        %960 = vrot.lane.b32.xlu0 %v605, 111
        %v961 = vpop.permute.xlu0 %960
        %962 = vrot.lane.b32.xlu0 %v607, 111
        %v963 = vpop.permute.xlu0 %962
        %964 = vrot.lane.b32.xlu0 %v606, 111
        %v965 = vpop.permute.xlu0 %964
        %966 = vrot.lane.b32.xlu0 %v608, 111
        %v967 = vpop.permute.xlu0 %966
        %vm968 = vcmp.lt.s32.totalorder %v628, 111
        %v969 = vsel %vm968, %v961, %v965
        %v970 = vsel %vm968, %v963, %v967
        %v971 = vsel %vm968, %v965, %v961
        %v972 = vsel %vm968, %v967, %v963
        %s973 = scalar_lea.vmem %s5, 16
        %v974 = vld [vmem:[%s973] ss:$8 sm:$0x3]
        %v976 = vlaneseq
        %v977 = vshrl.u32 %v976, 7
        %v978 = vsub.s32 0, %v977
        %v979 = vrot.slane %v974, %v978
        %v980 = vlaneseq
        %v981 = vshrl.u32 %v980, 7
        %v982 = vsub.s32 1, %v981
        %v983 = vrot.slane %v974, %v982
        %v986 = vmul.f32 %v969, %v979
        %v987 = vmul.f32 %v971, %v983
        %v988 = vmul.f32 %v970, %v979
        %v989 = vmul.f32 %v972, %v983
        %990 = vset.pattern.permute.xlu0 8
        %991 = vperm.xlu0 %990, %v418
        %v992 = vpop.permute.xlu0 %991
        %994 = vset.pattern.permute.xlu0 8
        %995 = vperm.xlu0 %994, %v419
        %v996 = vpop.permute.xlu0 %995
        %v998 = vmul.f32 %v986, %v992
        %v999 = vmul.f32 %v987, %v992
        %v1000 = vmul.f32 %v988, %v996
        %v1001 = vmul.f32 %v989, %v996
        %v1002 = vadd.f32 %v956, %v998
        %v1003 = vadd.f32 %v957, %v999
        %v1004 = vadd.f32 %v958, %v1000
        %v1005 = vadd.f32 %v959, %v1001
        %v1006 = vxor.u32 %v1002, 2147483648
        %v1007 = vxor.u32 %v1003, 2147483648
        %v1008 = vxor.u32 %v1004, 2147483648
        %v1009 = vxor.u32 %v1005, 2147483648
        %v1010 = vmul.f32 %v1006, 1.442695
        %v1011 = vpow.pop %v1010
        %v1012 = vmul.f32 %v1007, 1.442695
        %v1013 = vpow.pop %v1012
        %v1014 = vmul.f32 %v1008, 1.442695
        %v1015 = vpow.pop %v1014
        %v1016 = vmul.f32 %v1009, 1.442695
        %v1017 = vpow.pop %v1016
        %v1018 = vadd.f32 %v1011, 1.0
        %v1019 = vadd.f32 %v1013, 1.0
        %v1020 = vadd.f32 %v1015, 1.0
        %v1021 = vadd.f32 %v1017, 1.0
        %v1022 = vrcp.pop %v1018
        %v1023 = vmul.f32 1.0, %v1022
        %v1024 = vrcp.pop %v1019
        %v1025 = vmul.f32 1.0, %v1024
        %v1026 = vrcp.pop %v1020
        %v1027 = vmul.f32 1.0, %v1026
        %v1028 = vrcp.pop %v1021
        %v1029 = vmul.f32 1.0, %v1028
        %v1030 = vmul.f32 %v1002, %v1023
        %v1031 = vmul.f32 %v1003, %v1025
        %v1032 = vmul.f32 %v1004, %v1027
        %v1033 = vmul.f32 %v1005, %v1029
        %v1034 = vadd.f32 %v1030, %v1031
        %1035 = vadd.xlane.f32.xlu0 %v1034
        %v1036 = vpop.xlane.xlu0 %1035
        %v1037 = vadd.f32 %v1032, %v1033
        %1038 = vadd.xlane.f32.xlu0 %v1037
        %v1039 = vpop.xlane.xlu0 %1038
        %v1040 = vrcp.pop 256.0
        %v1041 = vmul.f32 %v1036, %v1040
        %v1042 = vmul.f32 %v1039, %v1040
        %v1043 = vmul.f32 %v422, %v1041
        %v1044 = vmul.f32 %v423, %v1042
        %vm1045 = vcmask 7168
        %v1046 = vsel %vm1045, %v1043, 0.0
        %v1047 = vsel %vm1045, %v1044, 0.0
        %v1048 = vadd.f32 %v1046, %v1047
        %v1049 = vrot.slane %v1048, 4
        %v1050 = vadd.f32 %v1048, %v1049
        %v1051 = vrot.slane %v1050, 2
        %v1052 = vadd.f32 %v1050, %v1051
        %v1053 = vrot.slane %v1052, 1
        %v1054 = vadd.f32 %v1052, %v1053
        %v1055 = vadd.f32 %v1054, %v424
        %v1056 = vxor.u32 %v1055, 2147483648
        %v1057 = vmul.f32 %v1056, 1.442695
        %v1058 = vpow.pop %v1057
        %v1059 = vadd.f32 %v1058, 1.0
        %v1060 = vrcp.pop %v1059
        %v1061 = vmul.f32 1.0, %v1060
        %v1062 = vmul.f32 %v1055, %v1061
        %v1063 = vlaneseq
        %v1064 = vshrl.u32 %v1063, 7
        %v1065 = vsub.s32 0, %v1064
        %v1066 = vrot.slane %v1062, %v1065
        %v1067 = vmul.f32 %v425, %v1066
        %v1068 = vmul.f32 %v426, %v1066
        %v1069 = vadd.f32 %v1067, 0.0
        %v1070 = vadd.f32 %v1068, 0.0
        %v1071 = vadd.f32 %v1069, %v427
        %v1072 = vadd.f32 %v1070, %v428
        %v1073 = vxor.u32 %v1071, 2147483648
        %v1074 = vxor.u32 %v1072, 2147483648
        %v1075 = vmul.f32 %v1073, 1.442695
        %v1076 = vpow.pop %v1075
        %v1077 = vmul.f32 %v1074, 1.442695
        %v1078 = vpow.pop %v1077
        %v1079 = vadd.f32 %v1076, 1.0
        %v1080 = vadd.f32 %v1078, 1.0
        %v1081 = vrcp.pop %v1079
        %v1082 = vmul.f32 1.0, %v1081
        %v1083 = vrcp.pop %v1080
        %v1084 = vmul.f32 1.0, %v1083
        %1086 = vset.pattern.permute.xlu0 0
        %1087 = vperm.xlu0 %1086, %v1082
        %v1088 = vpop.permute.xlu0 %1087
        %1091 = vset.pattern.permute.xlu0 0
        %1092 = vperm.xlu0 %1091, %v1084
        %v1093 = vpop.permute.xlu0 %1092
        %v1095 = vmul.f32 %v1030, %v1088
        %v1096 = vmul.f32 %v1031, %v1088
        %v1097 = vmul.f32 %v1032, %v1093
        %v1098 = vmul.f32 %v1033, %v1093
        %1100 = vset.pattern.permute.xlu0 0
        %1101 = vperm.xlu0 %1100, %v430
        %v1102 = vpop.permute.xlu0 %1101
        %vm1104 = vcmask 130048
        %v1106 = vsel %vm1104, %v429, 0
        %1108 = vmatprep.subr.mxu0 %v1096
        %1109 = vmatpush1.msra.mxu0 %v1095
        %1110 = vmatprep.subr.mxu0 %v1098
        %1111 = vmatpush1.msra.mxu0 %v1097
        %1112 = vmatprep.subr.mxu0 0.0
        %1113 = vmatpush1.msra.mxu0 0.0
        %1114 = vmatprep.subr.mxu0 0.0
        %1115 = vmatpush1.msra.mxu0 0.0
        %1116 = vmatprep.subr.mxu0 0.0
        %1117 = vmatpush1.msra.mxu0 0.0
        %1118 = vmatprep.subr.mxu0 0.0
        %1119 = vmatpush1.msra.mxu0 0.0
        %1120 = vmatprep.subr.mxu0 0.0
        %1121 = vmatpush1.msra.mxu0 0.0
        %1122 = vmatprep.subr.mxu0 0.0
        %1123 = vmatpush1.msra.mxu0 0.0
        %1124 = vmatprep.subr.mxu0 0.0
        %1125 = vmatpush1.msra.mxu0 0.0
        %1126 = vmatprep.subr.mxu0 0.0
        %1127 = vmatpush1.msra.mxu0 0.0
        %1128 = vmatprep.subr.mxu0 0.0
        %1129 = vmatpush1.msra.mxu0 0.0
        %1130 = vmatprep.subr.mxu0 0.0
        %1131 = vmatpush1.msra.mxu0 0.0
        %1132 = vmatprep.subr.mxu0 0.0
        %1133 = vmatpush1.msra.mxu0 0.0
        %1134 = vmatprep.subr.mxu0 0.0
        %1135 = vmatpush1.msra.mxu0 0.0
        %1136 = vmatprep.subr.mxu0 0.0
        %1137 = vmatpush1.msra.mxu0 0.0
        %1138 = vmatprep.subr.mxu0 0.0
        %1139 = vmatpush1.msra.mxu0 0.0
        %1140 = vmatprep.subr.mxu0 0.0
        %1141 = vmatpush1.msra.mxu0 0.0
        %1142 = vmatprep.subr.mxu0 0.0
        %1143 = vmatpush1.msra.mxu0 0.0
        %1144 = vmatprep.subr.mxu0 0.0
        %1145 = vmatpush1.msra.mxu0 0.0
        %1146 = vmatprep.subr.mxu0 0.0
        %1147 = vmatpush1.msra.mxu0 0.0
        %1148 = vmatprep.subr.mxu0 0.0
        %1149 = vmatpush1.msra.mxu0 0.0
        %1150 = vmatprep.subr.mxu0 0.0
        %1151 = vmatpush1.msra.mxu0 0.0
        %1152 = vmatprep.subr.mxu0 0.0
        %1153 = vmatpush1.msra.mxu0 0.0
        %1154 = vmatprep.subr.mxu0 0.0
        %1155 = vmatpush1.msra.mxu0 0.0
        %1156 = vmatprep.subr.mxu0 0.0
        %1157 = vmatpush1.msra.mxu0 0.0
        %1158 = vmatprep.subr.mxu0 0.0
        %1159 = vmatpush1.msra.mxu0 0.0
        %1160 = vmatprep.subr.mxu0 0.0
        %1161 = vmatpush1.msra.mxu0 0.0
        %1162 = vmatprep.subr.mxu0 0.0
        %1163 = vmatpush1.msra.mxu0 0.0
        %1164 = vmatprep.subr.mxu0 0.0
        %1165 = vmatpush1.msra.mxu0 0.0
        %1166 = vmatprep.subr.mxu0 0.0
        %1167 = vmatpush1.msra.mxu0 0.0
        %1168 = vmatprep.subr.mxu0 0.0
        %1169 = vmatpush1.msra.mxu0 0.0
        %1170 = vmatprep.subr.mxu0 0.0
        %1171 = vmatpush1.msra.mxu0 0.0
        %1172 = vmatprep.mubr.f32.mxu0 0.0
        %1173 = vmatmul.mubr.f32.gmra.mrb[0].mxu0 %v1106
        %v1174 = vpop.f32.mrb[0].mxu0
        %v1175 = vadd.f32 %v1102, %v1174
        %v1176 = vpop.f32.mrb[0].mxu0
        %v1177 = vadd.f32 %v1102, %v1176
        %1178 = vdwg.mxu0
        %1179 = vst [vmem:[%s408] sm:$0xff] %v1175
        %1180 = vst [vmem:[%s408 + $0x8] sm:$0xff] %v1177
        %s1181 = sand.u32 %s293, 1
        %s1182 = scalar_lea.sflag [#allocation4], %s1181
        %s1183 = sand.u32 %s293, 1
        %s1184 = smul.addr %s1183, 16
        %s1185 = scalar_lea.vmem [#allocation3], %s1184
        // Predicated region
        $region69: #{tpu_custom_call.1} parent=67 // pred_check
          %p1186 = pneg %p303
        $region70: #{tpu_custom_call.1} parent=67 // pred_check_branch
          %1188 = sbr.rel (%p1186) target = $region72
        $region71: #{tpu_custom_call.1} parent=67 // pred_region
          %s1190 = ssub.s32 256, 256
          %1191 = vsyncadd %s1182, %s1190
          %s1192 = smul.addr %s28, 2
          %s1193 = smul.addr %s1192, 128
          %s1194 = scalar_lea.hbm %s12, %s1193
          %s1196 = sshll.u32 %s1185, 4
          %s1197 = int_to_ptr.vmem [resolvable:$true] %s1196
          %1199 = dma.vmem_to_hbm [thread:$0]  %s1197, 256, %s1194, %s1182
        $region72: #{tpu_custom_call.1} parent=67 // pred_fallthru
          _
      $region68: #{tpu_custom_call.1} parent=5 // pred_fallthru
        _
      %p1200 = scmp.le.s32.totalorder 2, %s23
      // Predicated region
      $region73: #{tpu_custom_call.1} parent=5 // pred_check
        %p1201 = pneg %p1200
      $region74: #{tpu_custom_call.1} parent=5 // pred_check_branch
        %1203 = sbr.rel (%p1201) target = $region76
      $region75: #{tpu_custom_call.1} parent=5 // pred_region
        %s1204 = ssub.s32 %s23, 2
        // Predicated region
        $region77: #{tpu_custom_call.1} parent=75 // pred_check
          %p1205 = pneg %p309
        $region78: #{tpu_custom_call.1} parent=75 // pred_check_branch
          %1207 = sbr.rel (%p1205) target = $region80
        $region79: #{tpu_custom_call.1} parent=75 // pred_region
          %s1208 = sand.u32 %s294, 1
          %s1209 = scalar_lea.sflag [#allocation4], %s1208
          %s1210 = sand.u32 %s294, 1
          %s1211 = smul.addr %s1210, 16
          %s1212 = scalar_lea.vmem [#allocation3], %s1211
          %1213 = dma.done %s1209, 256
        $region80: #{tpu_custom_call.1} parent=75 // pred_fallthru
          _
      $region76: #{tpu_custom_call.1} parent=5 // pred_fallthru
        _
    $region6: #{tpu_custom_call.1} parent=1 // loop_footer
      %s27 = sadd.s32 1, %s23
    $region7: #{tpu_custom_call.1} parent=1 // loop_footer_branch
      %22 = sbr.rel target = $region3
    $region8: #{tpu_custom_call.1} parent=1 // loop_exit
      _
    %1214 = vsyncpa [#allocation4], 1
    %s1215 = scalar_lea.sflag [#allocation4], 1
    %1216 = vsyncpa %s1215, 1

</llo_original>
